<compile_context>
chip_gen: v6e
topology: v6e:2x2x1
jax: 0.10.0
libtpu: 0.0.40
codegen_flags: <defaults>
</compile_context>

<pallas_src>
import math
import functools

import jax
import jax.numpy as jnp
from jax.experimental import pallas as pl
from jax.experimental.pallas import tpu as pltpu


def _keep_mask(shape, salt_i32, keep_threshold):
    """Dropout keep-mask (True = keep) from a counter-hash PRNG.

    Pure integer VPU ops (iota + mul/xor/shift + unsigned compare); no TPU-only
    PRNG primitives, so it runs identically on hardware and in interpret mode.
    """
    lin = jnp.zeros(shape, jnp.int32)
    stride = 1
    for ax in range(len(shape) - 1, -1, -1):
        lin = lin + jax.lax.broadcasted_iota(jnp.int32, shape, ax) * stride
        stride *= shape[ax]
    x = (lin + salt_i32).astype(jnp.uint32)
    # lowbias32-style avalanche hash
    x = x * jnp.uint32(2654435761)
    x = x ^ (x >> 16)
    x = x * jnp.uint32(0x7FEB352D)
    x = x ^ (x >> 15)
    x = x * jnp.uint32(0x846CA68B)
    x = x ^ (x >> 16)
    return x < jnp.uint32(keep_threshold)


def mha_kernel(q_ref, k_ref, v_ref, bias_ref,
               wq_ref, bq_ref, wk_ref, bk_ref, wv_ref, bv_ref,
               wo_ref, bo_ref, gamma_ref, beta_ref,
               out_ref, *, n_head, d_k, p_drop, seed, eps=1e-5):
    b = pl.program_id(0)

    q_in = q_ref[0]          # (Lq, D) f32
    k_in = k_ref[0]          # (Lk, D) f32
    v_in = v_ref[0]          # (Lk, D) f32
    residual = q_in

    # ---- dropout setup (integer-threshold compare; static when p_drop == 0) ----
    if p_drop > 0.0:
        keep_p = 1.0 - p_drop
        keep_threshold = min(int(round(keep_p * 2.0 ** 32)), 2 ** 32 - 1)
        inv_keep = 1.0 / keep_p
        batch_salt = b * jnp.int32(1000003) + jnp.int32(seed & 0x7FFFFFFF)

    def dropout(x, call_id):
        if p_drop <= 0.0:
            return x
        salt = batch_salt + jnp.int32(call_id * 7919)
        keep = _keep_mask(x.shape, salt, keep_threshold)
        return jnp.where(keep, x * inv_keep, 0.0)

    # ---- Q/K/V projections: bf16 MXU operands, f32 accumulation ----
    def project(x, w_ref, b_ref):
        acc = jnp.dot(x.astype(jnp.bfloat16), w_ref[...],
                      preferred_element_type=jnp.float32)
        return (acc + b_ref[...]).astype(jnp.bfloat16)

    q = project(q_in, wq_ref, bq_ref)   # (Lq, D) bf16
    k = project(k_in, wk_ref, bk_ref)   # (Lk, D) bf16
    v = project(v_in, wv_ref, bv_ref)   # (Lk, D) bf16

    # ---- split heads: (L, D) -> (H, L, d_k) via static lane slices + stack ----
    q3 = jnp.stack([q[:, h * d_k:(h + 1) * d_k] for h in range(n_head)], axis=0)
    k3 = jnp.stack([k[:, h * d_k:(h + 1) * d_k] for h in range(n_head)], axis=0)
    v3 = jnp.stack([v[:, h * d_k:(h + 1) * d_k] for h in range(n_head)], axis=0)

    # ---- scaled-dot-product attention, all heads batched on the MXU ----
    scale = 1.0 / math.sqrt(d_k)
    scores = jnp.einsum('hqd,hkd->hqk', q3, k3,
                        preferred_element_type=jnp.float32)       # (H, Lq, Lk) f32
    scores = scores * scale + bias_ref[...][None, :, :]           # additive mask bias

    m = jnp.max(scores, axis=-1, keepdims=True)
    e = jnp.exp(scores - m)
    attn = e / jnp.sum(e, axis=-1, keepdims=True)                 # softmax (f32)
    attn = dropout(attn, call_id=1)                               # attention dropout

    ctx3 = jnp.einsum('hqk,hkd->hqd', attn.astype(jnp.bfloat16), v3,
                      preferred_element_type=jnp.float32)         # (H, Lq, d_k) f32

    # concat heads back -> (Lq, D); same order as .transpose(1,2).view(B, Lq, -1)
    ctx = jnp.concatenate([ctx3[h] for h in range(n_head)], axis=-1)

    # ---- output projection + dropout + residual + LayerNorm (f32 elementwise) ----
    out = jnp.dot(ctx.astype(jnp.bfloat16), wo_ref[...],
                  preferred_element_type=jnp.float32) + bo_ref[...]
    out = dropout(out, call_id=2)
    out = out + residual

    mean = jnp.mean(out, axis=-1, keepdims=True)
    var = jnp.mean(jnp.square(out - mean), axis=-1, keepdims=True)
    y = (out - mean) * jax.lax.rsqrt(var + eps)
    y = y * gamma_ref[...] + beta_ref[...]

    out_ref[0] = y.astype(out_ref.dtype)


def multi_head_attention(q, k, v, mask, params, *, n_head, p_drop=0.1,
                         seed=0, training=True):
    """Fused MHA forward matching MultiHeadAttention.forward.

    q/k/v: [B, L, d_model] f32.  mask: [Lq, Lk], nonzero = attend (shared across batch).
    Weights in `params` are pre-transposed to [d_in, d_out] so the kernel does x @ W + b.
    """
    B, Lq, D = q.shape
    _, Lk, _ = k.shape
    assert D % n_head == 0
    d_k = D // n_head

    # Additive mask bias computed once; finite -1e30 avoids NaN on fully-masked rows.
    mask_bias = jnp.where(mask != 0, 0.0, -1e30).astype(jnp.float32)

    # Weights fed to the MXU in bf16 (half the weight DMA; accumulation stays f32).
    wq = params["wq"].astype(jnp.bfloat16)
    wk = params["wk"].astype(jnp.bfloat16)
    wv = params["wv"].astype(jnp.bfloat16)
    wo = params["wo"].astype(jnp.bfloat16)

    p_eff = float(p_drop) if training else 0.0
    kernel = functools.partial(mha_kernel, n_head=n_head, d_k=d_k,
                               p_drop=p_eff, seed=int(seed))

    w_spec = pl.BlockSpec((D, D), lambda b: (0, 0))
    b_spec = pl.BlockSpec((1, D), lambda b: (0, 0))

    return pl.pallas_call(
        kernel,
        out_shape=jax.ShapeDtypeStruct((B, Lq, D), q.dtype),
        grid=(B,),
        in_specs=[
            pl.BlockSpec((1, Lq, D), lambda b: (b, 0, 0)),   # q
            pl.BlockSpec((1, Lk, D), lambda b: (b, 0, 0)),   # k
            pl.BlockSpec((1, Lk, D), lambda b: (b, 0, 0)),   # v
            pl.BlockSpec((Lq, Lk), lambda b: (0, 0)),        # mask bias (shared)
            w_spec, b_spec,                                  # w_q
            w_spec, b_spec,                                  # w_k
            w_spec, b_spec,                                  # w_v
            w_spec, b_spec,                                  # fc
            b_spec, b_spec,                                  # layer_norm gamma, beta
        ],
        out_specs=pl.BlockSpec((1, Lq, D), lambda b: (b, 0, 0)),
        compiler_params=pltpu.CompilerParams(
            dimension_semantics=("parallel",)),              # batch steps are independent
    )(q, k, v, mask_bias,
      wq, params["bq"], wk, params["bk"], wv, params["bv"],
      wo, params["bo"], params["gamma"], params["beta"])


if __name__ == "__main__":
    # Small but lane-friendly shapes: d_model multiple of 128 keeps all loads/stores
    # full-lane (lane-dense writeback path).
    B, L, D, H = 2, 16, 128, 4       # batch, seq_len, d_model, n_head
    P_DROP = 0.1

    key = jax.random.PRNGKey(0)
    ks = jax.random.split(key, 12)
    bound = 1.0 / math.sqrt(D)       # nn.Linear-style uniform init

    def make_linear(kw, kb):
        w = jax.random.uniform(kw, (D, D), jnp.float32, -bound, bound)   # [d_in, d_out]
        bias = jax.random.uniform(kb, (1, D), jnp.float32, -bound, bound)
        return w, bias

    wq, bq = make_linear(ks[0], ks[1])
    wk, bk = make_linear(ks[2], ks[3])
    wv, bv = make_linear(ks[4], ks[5])
    wo, bo = make_linear(ks[6], ks[7])
    params = dict(wq=wq, bq=bq, wk=wk, bk=bk, wv=wv, bv=bv, wo=wo, bo=bo,
                  gamma=jnp.ones((1, D), jnp.float32),
                  beta=jnp.zeros((1, D), jnp.float32))

    q = jax.random.normal(ks[8], (B, L, D), jnp.float32)
    k = jax.random.normal(ks[9], (B, L, D), jnp.float32)
    v = jax.random.normal(ks[10], (B, L, D), jnp.float32)
    # Causal attention mask [src_len, tgt_len]; nonzero = attend.
    mask = jnp.tril(jnp.ones((L, L), jnp.int32))

    out = multi_head_attention(q, k, v, mask, params,
                               n_head=H, p_drop=P_DROP, seed=1234, training=True)
    out = jax.block_until_ready(out)

    assert out.shape == (B, L, D)
    assert bool(jnp.isfinite(out).all())
    print("KERNEL_OK")
</pallas_src>

<mosaic_0001>
module attributes {stable_mosaic.version = 11 : i64} {
  func.func @mha_kernel(%arg0: i32, %arg1: memref<1x16x128xf32, #tpu.memory_space<vmem>>, %arg2: memref<1x16x128xf32, #tpu.memory_space<vmem>>, %arg3: memref<1x16x128xf32, #tpu.memory_space<vmem>>, %arg4: memref<16x16xf32, #tpu.memory_space<vmem>>, %arg5: memref<128x128xbf16, #tpu.memory_space<vmem>>, %arg6: memref<1x128xf32, #tpu.memory_space<vmem>>, %arg7: memref<128x128xbf16, #tpu.memory_space<vmem>>, %arg8: memref<1x128xf32, #tpu.memory_space<vmem>>, %arg9: memref<128x128xbf16, #tpu.memory_space<vmem>>, %arg10: memref<1x128xf32, #tpu.memory_space<vmem>>, %arg11: memref<128x128xbf16, #tpu.memory_space<vmem>>, %arg12: memref<1x128xf32, #tpu.memory_space<vmem>>, %arg13: memref<1x128xf32, #tpu.memory_space<vmem>>, %arg14: memref<1x128xf32, #tpu.memory_space<vmem>>, %arg15: memref<1x16x128xf32, #tpu.memory_space<vmem>>) attributes {dimension_semantics = [#tpu.dimension_semantics<parallel>], iteration_bounds = array<i64: 2>, scalar_prefetch = 0 : i64, scratch_operands = 0 : i64, tpu.core_type = #tpu.core_type<tc>, window_params = [{transform_indices = @transform_0, window_bounds = array<i64: 1, 16, 128>}, {transform_indices = @transform_1, window_bounds = array<i64: 1, 16, 128>}, {transform_indices = @transform_2, window_bounds = array<i64: 1, 16, 128>}, {pipeline_mode = #tpu.pipeline_mode<synchronous>, transform_indices = @transform_3, window_bounds = array<i64: 16, 16>}, {pipeline_mode = #tpu.pipeline_mode<synchronous>, transform_indices = @transform_4, window_bounds = array<i64: 128, 128>}, {pipeline_mode = #tpu.pipeline_mode<synchronous>, transform_indices = @transform_5, window_bounds = array<i64: 1, 128>}, {pipeline_mode = #tpu.pipeline_mode<synchronous>, transform_indices = @transform_6, window_bounds = array<i64: 128, 128>}, {pipeline_mode = #tpu.pipeline_mode<synchronous>, transform_indices = @transform_7, window_bounds = array<i64: 1, 128>}, {pipeline_mode = #tpu.pipeline_mode<synchronous>, transform_indices = @transform_8, window_bounds = array<i64: 128, 128>}, {pipeline_mode = #tpu.pipeline_mode<synchronous>, transform_indices = @transform_9, window_bounds = array<i64: 1, 128>}, {pipeline_mode = #tpu.pipeline_mode<synchronous>, transform_indices = @transform_10, window_bounds = array<i64: 128, 128>}, {pipeline_mode = #tpu.pipeline_mode<synchronous>, transform_indices = @transform_11, window_bounds = array<i64: 1, 128>}, {pipeline_mode = #tpu.pipeline_mode<synchronous>, transform_indices = @transform_12, window_bounds = array<i64: 1, 128>}, {pipeline_mode = #tpu.pipeline_mode<synchronous>, transform_indices = @transform_13, window_bounds = array<i64: 1, 128>}, {transform_indices = @transform_14, window_bounds = array<i64: 1, 16, 128>}]} {
    %c0 = arith.constant 0 : index
    %c0_0 = arith.constant 0 : index
    %c0_1 = arith.constant 0 : index
    %0 = vector.load %arg1[%c0, %c0_0, %c0_1] : memref<1x16x128xf32, #tpu.memory_space<vmem>>, vector<1x16x128xf32>
    %1 = vector.shape_cast %0 : vector<1x16x128xf32> to vector<16x128xf32>
    %c0_2 = arith.constant 0 : index
    %c0_3 = arith.constant 0 : index
    %c0_4 = arith.constant 0 : index
    %2 = vector.load %arg2[%c0_2, %c0_3, %c0_4] : memref<1x16x128xf32, #tpu.memory_space<vmem>>, vector<1x16x128xf32>
    %3 = vector.shape_cast %2 : vector<1x16x128xf32> to vector<16x128xf32>
    %c0_5 = arith.constant 0 : index
    %c0_6 = arith.constant 0 : index
    %c0_7 = arith.constant 0 : index
    %4 = vector.load %arg3[%c0_5, %c0_6, %c0_7] : memref<1x16x128xf32, #tpu.memory_space<vmem>>, vector<1x16x128xf32>
    %5 = vector.shape_cast %4 : vector<1x16x128xf32> to vector<16x128xf32>
    %c1000003_i32 = arith.constant 1000003 : i32
    %6 = arith.muli %arg0, %c1000003_i32 : i32
    %c1234_i32 = arith.constant 1234 : i32
    %7 = arith.addi %6, %c1234_i32 : i32
    %8 = arith.truncf %1 : vector<16x128xf32> to vector<16x128xbf16>
    %c0_8 = arith.constant 0 : index
    %c0_9 = arith.constant 0 : index
    %9 = vector.load %arg5[%c0_8, %c0_9] : memref<128x128xbf16, #tpu.memory_space<vmem>>, vector<128x128xbf16>
    %cst = arith.constant dense<0.000000e+00> : vector<16x128xf32>
    %10 = tpu.matmul %8, %9, %cst {dimension_numbers = #tpu.dot_dimension_numbers<[1], [0], [0], [1], [0, 0, 1, 1], [], []>} : vector<16x128xbf16>, vector<128x128xbf16>, vector<16x128xf32> -> vector<16x128xf32>
    %c0_10 = arith.constant 0 : index
    %c0_11 = arith.constant 0 : index
    %11 = vector.load %arg6[%c0_10, %c0_11] : memref<1x128xf32, #tpu.memory_space<vmem>>, vector<1x128xf32>
    %12 = vector.broadcast %11 : vector<1x128xf32> to vector<16x128xf32>
    %13 = arith.addf %10, %12 : vector<16x128xf32>
    %14 = arith.truncf %13 : vector<16x128xf32> to vector<16x128xbf16>
    %15 = arith.truncf %3 : vector<16x128xf32> to vector<16x128xbf16>
    %c0_12 = arith.constant 0 : index
    %c0_13 = arith.constant 0 : index
    %16 = vector.load %arg7[%c0_12, %c0_13] : memref<128x128xbf16, #tpu.memory_space<vmem>>, vector<128x128xbf16>
    %cst_14 = arith.constant dense<0.000000e+00> : vector<16x128xf32>
    %17 = tpu.matmul %15, %16, %cst_14 {dimension_numbers = #tpu.dot_dimension_numbers<[1], [0], [0], [1], [0, 0, 1, 1], [], []>} : vector<16x128xbf16>, vector<128x128xbf16>, vector<16x128xf32> -> vector<16x128xf32>
    %c0_15 = arith.constant 0 : index
    %c0_16 = arith.constant 0 : index
    %18 = vector.load %arg8[%c0_15, %c0_16] : memref<1x128xf32, #tpu.memory_space<vmem>>, vector<1x128xf32>
    %19 = vector.broadcast %18 : vector<1x128xf32> to vector<16x128xf32>
    %20 = arith.addf %17, %19 : vector<16x128xf32>
    %21 = arith.truncf %20 : vector<16x128xf32> to vector<16x128xbf16>
    %22 = arith.truncf %5 : vector<16x128xf32> to vector<16x128xbf16>
    %c0_17 = arith.constant 0 : index
    %c0_18 = arith.constant 0 : index
    %23 = vector.load %arg9[%c0_17, %c0_18] : memref<128x128xbf16, #tpu.memory_space<vmem>>, vector<128x128xbf16>
    %cst_19 = arith.constant dense<0.000000e+00> : vector<16x128xf32>
    %24 = tpu.matmul %22, %23, %cst_19 {dimension_numbers = #tpu.dot_dimension_numbers<[1], [0], [0], [1], [0, 0, 1, 1], [], []>} : vector<16x128xbf16>, vector<128x128xbf16>, vector<16x128xf32> -> vector<16x128xf32>
    %c0_20 = arith.constant 0 : index
    %c0_21 = arith.constant 0 : index
    %25 = vector.load %arg10[%c0_20, %c0_21] : memref<1x128xf32, #tpu.memory_space<vmem>>, vector<1x128xf32>
    %26 = vector.broadcast %25 : vector<1x128xf32> to vector<16x128xf32>
    %27 = arith.addf %24, %26 : vector<16x128xf32>
    %28 = arith.truncf %27 : vector<16x128xf32> to vector<16x128xbf16>
    %29 = vector.extract_strided_slice %14 {offsets = [0, 0], sizes = [16, 32], strides = [1, 1]} : vector<16x128xbf16> to vector<16x32xbf16>
    %30 = vector.extract_strided_slice %14 {offsets = [0, 32], sizes = [16, 32], strides = [1, 1]} : vector<16x128xbf16> to vector<16x32xbf16>
    %31 = vector.extract_strided_slice %14 {offsets = [0, 64], sizes = [16, 32], strides = [1, 1]} : vector<16x128xbf16> to vector<16x32xbf16>
    %32 = vector.extract_strided_slice %14 {offsets = [0, 96], sizes = [16, 32], strides = [1, 1]} : vector<16x128xbf16> to vector<16x32xbf16>
    %33 = vector.shape_cast %29 : vector<16x32xbf16> to vector<1x16x32xbf16>
    %34 = vector.shape_cast %30 : vector<16x32xbf16> to vector<1x16x32xbf16>
    %35 = vector.shape_cast %31 : vector<16x32xbf16> to vector<1x16x32xbf16>
    %36 = vector.shape_cast %32 : vector<16x32xbf16> to vector<1x16x32xbf16>
    %37 = tpu.concatenate %33, %34, %35, %36 in 0 : vector<1x16x32xbf16>, vector<1x16x32xbf16>, vector<1x16x32xbf16>, vector<1x16x32xbf16> -> vector<4x16x32xbf16>
    %38 = vector.extract_strided_slice %21 {offsets = [0, 0], sizes = [16, 32], strides = [1, 1]} : vector<16x128xbf16> to vector<16x32xbf16>
    %39 = vector.extract_strided_slice %21 {offsets = [0, 32], sizes = [16, 32], strides = [1, 1]} : vector<16x128xbf16> to vector<16x32xbf16>
    %40 = vector.extract_strided_slice %21 {offsets = [0, 64], sizes = [16, 32], strides = [1, 1]} : vector<16x128xbf16> to vector<16x32xbf16>
    %41 = vector.extract_strided_slice %21 {offsets = [0, 96], sizes = [16, 32], strides = [1, 1]} : vector<16x128xbf16> to vector<16x32xbf16>
    %42 = vector.shape_cast %38 : vector<16x32xbf16> to vector<1x16x32xbf16>
    %43 = vector.shape_cast %39 : vector<16x32xbf16> to vector<1x16x32xbf16>
    %44 = vector.shape_cast %40 : vector<16x32xbf16> to vector<1x16x32xbf16>
    %45 = vector.shape_cast %41 : vector<16x32xbf16> to vector<1x16x32xbf16>
    %46 = tpu.concatenate %42, %43, %44, %45 in 0 : vector<1x16x32xbf16>, vector<1x16x32xbf16>, vector<1x16x32xbf16>, vector<1x16x32xbf16> -> vector<4x16x32xbf16>
    %47 = vector.extract_strided_slice %28 {offsets = [0, 0], sizes = [16, 32], strides = [1, 1]} : vector<16x128xbf16> to vector<16x32xbf16>
    %48 = vector.extract_strided_slice %28 {offsets = [0, 32], sizes = [16, 32], strides = [1, 1]} : vector<16x128xbf16> to vector<16x32xbf16>
    %49 = vector.extract_strided_slice %28 {offsets = [0, 64], sizes = [16, 32], strides = [1, 1]} : vector<16x128xbf16> to vector<16x32xbf16>
    %50 = vector.extract_strided_slice %28 {offsets = [0, 96], sizes = [16, 32], strides = [1, 1]} : vector<16x128xbf16> to vector<16x32xbf16>
    %51 = vector.shape_cast %47 : vector<16x32xbf16> to vector<1x16x32xbf16>
    %52 = vector.shape_cast %48 : vector<16x32xbf16> to vector<1x16x32xbf16>
    %53 = vector.shape_cast %49 : vector<16x32xbf16> to vector<1x16x32xbf16>
    %54 = vector.shape_cast %50 : vector<16x32xbf16> to vector<1x16x32xbf16>
    %55 = tpu.concatenate %51, %52, %53, %54 in 0 : vector<1x16x32xbf16>, vector<1x16x32xbf16>, vector<1x16x32xbf16>, vector<1x16x32xbf16> -> vector<4x16x32xbf16>
    "tpu.trace_start"() <{level = 10 : i32, message = "hqd,hkd->hqk"}> : () -> ()
    %cst_22 = arith.constant dense<0.000000e+00> : vector<4x16x16xf32>
    %56 = tpu.matmul %37, %46, %cst_22 {dimension_numbers = #tpu.dot_dimension_numbers<[2], [2], [1], [1], [0, 0, 0, 1, 1, 1], [0], [0]>} : vector<4x16x32xbf16>, vector<4x16x32xbf16>, vector<4x16x16xf32> -> vector<4x16x16xf32>
    "tpu.trace_stop"() : () -> ()
    %cst_23 = arith.constant 0.176776692 : f32
    %57 = vector.broadcast %cst_23 : f32 to vector<4x16x16xf32>
    %58 = arith.mulf %56, %57 : vector<4x16x16xf32>
    %c0_24 = arith.constant 0 : index
    %c0_25 = arith.constant 0 : index
    %59 = vector.load %arg4[%c0_24, %c0_25] : memref<16x16xf32, #tpu.memory_space<vmem>>, vector<16x16xf32>
    %60 = vector.shape_cast %59 : vector<16x16xf32> to vector<1x16x16xf32>
    %61 = vector.broadcast %60 : vector<1x16x16xf32> to vector<4x16x16xf32>
    %62 = arith.addf %58, %61 : vector<4x16x16xf32>
    %cst_26 = arith.constant dense<0xFF800000> : vector<4x16xf32>
    %63 = vector.multi_reduction <maximumf>, %62, %cst_26 [2] : vector<4x16x16xf32> to vector<4x16xf32>
    %64 = vector.shape_cast %63 : vector<4x16xf32> to vector<4x16x1xf32>
    %65 = vector.broadcast %64 : vector<4x16x1xf32> to vector<4x16x16xf32>
    %66 = arith.subf %62, %65 : vector<4x16x16xf32>
    %67 = math.exp %66 : vector<4x16x16xf32>
    %cst_27 = arith.constant dense<0.000000e+00> : vector<4x16xf32>
    %68 = vector.multi_reduction <add>, %67, %cst_27 [2] : vector<4x16x16xf32> to vector<4x16xf32>
    %69 = vector.shape_cast %68 : vector<4x16xf32> to vector<4x16x1xf32>
    %70 = vector.broadcast %69 : vector<4x16x1xf32> to vector<4x16x16xf32>
    %71 = arith.divf %67, %70 : vector<4x16x16xf32>
    %c7919_i32 = arith.constant 7919 : i32
    %72 = arith.addi %7, %c7919_i32 : i32
    %c0_i32 = arith.constant 0 : i32
    %73 = vector.broadcast %c0_i32 : i32 to vector<4x16x16xi32>
    %74 = tpu.iota {dimensions = array<i32: 2>} : vector<4x16x16xi32>
    %c1_i32 = arith.constant 1 : i32
    %75 = vector.broadcast %c1_i32 : i32 to vector<4x16x16xi32>
    %76 = arith.muli %74, %75 : vector<4x16x16xi32>
    %77 = arith.addi %73, %76 : vector<4x16x16xi32>
    %78 = tpu.iota {dimensions = array<i32: 1>} : vector<4x16x16xi32>
    %c16_i32 = arith.constant 16 : i32
    %79 = vector.broadcast %c16_i32 : i32 to vector<4x16x16xi32>
    %80 = arith.muli %78, %79 : vector<4x16x16xi32>
    %81 = arith.addi %77, %80 : vector<4x16x16xi32>
    %82 = tpu.iota {dimensions = array<i32: 0>} : vector<4x16x16xi32>
    %c256_i32 = arith.constant 256 : i32
    %83 = vector.broadcast %c256_i32 : i32 to vector<4x16x16xi32>
    %84 = arith.muli %82, %83 : vector<4x16x16xi32>
    %85 = arith.addi %81, %84 : vector<4x16x16xi32>
    %86 = vector.broadcast %72 : i32 to vector<4x16x16xi32>
    %87 = arith.addi %85, %86 : vector<4x16x16xi32>
    %c-1640531535_i32 = arith.constant -1640531535 : i32
    %88 = vector.broadcast %c-1640531535_i32 : i32 to vector<4x16x16xi32>
    %89 = arith.muli %87, %88 : vector<4x16x16xi32>
    %c16_i32_28 = arith.constant 16 : i32
    %90 = vector.broadcast %c16_i32_28 : i32 to vector<4x16x16xi32>
    %91 = arith.shrui %89, %90 : vector<4x16x16xi32>
    %92 = arith.xori %89, %91 : vector<4x16x16xi32>
    %c2146121005_i32 = arith.constant 2146121005 : i32
    %93 = vector.broadcast %c2146121005_i32 : i32 to vector<4x16x16xi32>
    %94 = arith.muli %92, %93 : vector<4x16x16xi32>
    %c15_i32 = arith.constant 15 : i32
    %95 = vector.broadcast %c15_i32 : i32 to vector<4x16x16xi32>
    %96 = arith.shrui %94, %95 : vector<4x16x16xi32>
    %97 = arith.xori %94, %96 : vector<4x16x16xi32>
    %c-2073254261_i32 = arith.constant -2073254261 : i32
    %98 = vector.broadcast %c-2073254261_i32 : i32 to vector<4x16x16xi32>
    %99 = arith.muli %97, %98 : vector<4x16x16xi32>
    %c16_i32_29 = arith.constant 16 : i32
    %100 = vector.broadcast %c16_i32_29 : i32 to vector<4x16x16xi32>
    %101 = arith.shrui %99, %100 : vector<4x16x16xi32>
    %102 = arith.xori %99, %101 : vector<4x16x16xi32>
    %c-429496730_i32 = arith.constant -429496730 : i32
    %103 = vector.broadcast %c-429496730_i32 : i32 to vector<4x16x16xi32>
    %104 = arith.cmpi ult, %102, %103 : vector<4x16x16xi32>
    %cst_30 = arith.constant 1.11111116 : f32
    %105 = vector.broadcast %cst_30 : f32 to vector<4x16x16xf32>
    %106 = arith.mulf %71, %105 : vector<4x16x16xf32>
    %cst_31 = arith.constant 0.000000e+00 : f32
    %107 = vector.broadcast %cst_31 : f32 to vector<4x16x16xf32>
    %108 = arith.select %104, %106, %107 : vector<4x16x16xi1>, vector<4x16x16xf32>
    %109 = arith.truncf %108 : vector<4x16x16xf32> to vector<4x16x16xbf16>
    "tpu.trace_start"() <{level = 10 : i32, message = "hqk,hkd->hqd"}> : () -> ()
    %cst_32 = arith.constant dense<0.000000e+00> : vector<4x16x32xf32>
    %110 = tpu.matmul %109, %55, %cst_32 {dimension_numbers = #tpu.dot_dimension_numbers<[2], [1], [1], [2], [0, 0, 0, 1, 1, 2], [0], [0]>} : vector<4x16x16xbf16>, vector<4x16x32xbf16>, vector<4x16x32xf32> -> vector<4x16x32xf32>
    "tpu.trace_stop"() : () -> ()
    %111 = vector.extract_strided_slice %110 {offsets = [0, 0, 0], sizes = [1, 16, 32], strides = [1, 1, 1]} : vector<4x16x32xf32> to vector<1x16x32xf32>
    %112 = vector.shape_cast %111 : vector<1x16x32xf32> to vector<16x32xf32>
    %113 = vector.extract_strided_slice %110 {offsets = [1, 0, 0], sizes = [1, 16, 32], strides = [1, 1, 1]} : vector<4x16x32xf32> to vector<1x16x32xf32>
    %114 = vector.shape_cast %113 : vector<1x16x32xf32> to vector<16x32xf32>
    %115 = vector.extract_strided_slice %110 {offsets = [2, 0, 0], sizes = [1, 16, 32], strides = [1, 1, 1]} : vector<4x16x32xf32> to vector<1x16x32xf32>
    %116 = vector.shape_cast %115 : vector<1x16x32xf32> to vector<16x32xf32>
    %117 = vector.extract_strided_slice %110 {offsets = [3, 0, 0], sizes = [1, 16, 32], strides = [1, 1, 1]} : vector<4x16x32xf32> to vector<1x16x32xf32>
    %118 = vector.shape_cast %117 : vector<1x16x32xf32> to vector<16x32xf32>
    %119 = tpu.concatenate %112, %114, %116, %118 in 1 : vector<16x32xf32>, vector<16x32xf32>, vector<16x32xf32>, vector<16x32xf32> -> vector<16x128xf32>
    %120 = arith.truncf %119 : vector<16x128xf32> to vector<16x128xbf16>
    %c0_33 = arith.constant 0 : index
    %c0_34 = arith.constant 0 : index
    %121 = vector.load %arg11[%c0_33, %c0_34] : memref<128x128xbf16, #tpu.memory_space<vmem>>, vector<128x128xbf16>
    %cst_35 = arith.constant dense<0.000000e+00> : vector<16x128xf32>
    %122 = tpu.matmul %120, %121, %cst_35 {dimension_numbers = #tpu.dot_dimension_numbers<[1], [0], [0], [1], [0, 0, 1, 1], [], []>} : vector<16x128xbf16>, vector<128x128xbf16>, vector<16x128xf32> -> vector<16x128xf32>
    %c0_36 = arith.constant 0 : index
    %c0_37 = arith.constant 0 : index
    %123 = vector.load %arg12[%c0_36, %c0_37] : memref<1x128xf32, #tpu.memory_space<vmem>>, vector<1x128xf32>
    %124 = vector.broadcast %123 : vector<1x128xf32> to vector<16x128xf32>
    %125 = arith.addf %122, %124 : vector<16x128xf32>
    %c15838_i32 = arith.constant 15838 : i32
    %126 = arith.addi %7, %c15838_i32 : i32
    %c0_i32_38 = arith.constant 0 : i32
    %127 = vector.broadcast %c0_i32_38 : i32 to vector<16x128xi32>
    %128 = tpu.iota {dimensions = array<i32: 1>} : vector<16x128xi32>
    %c1_i32_39 = arith.constant 1 : i32
    %129 = vector.broadcast %c1_i32_39 : i32 to vector<16x128xi32>
    %130 = arith.muli %128, %129 : vector<16x128xi32>
    %131 = arith.addi %127, %130 : vector<16x128xi32>
    %132 = tpu.iota {dimensions = array<i32: 0>} : vector<16x128xi32>
    %c128_i32 = arith.constant 128 : i32
    %133 = vector.broadcast %c128_i32 : i32 to vector<16x128xi32>
    %134 = arith.muli %132, %133 : vector<16x128xi32>
    %135 = arith.addi %131, %134 : vector<16x128xi32>
    %136 = vector.broadcast %126 : i32 to vector<16x128xi32>
    %137 = arith.addi %135, %136 : vector<16x128xi32>
    %c-1640531535_i32_40 = arith.constant -1640531535 : i32
    %138 = vector.broadcast %c-1640531535_i32_40 : i32 to vector<16x128xi32>
    %139 = arith.muli %137, %138 : vector<16x128xi32>
    %c16_i32_41 = arith.constant 16 : i32
    %140 = vector.broadcast %c16_i32_41 : i32 to vector<16x128xi32>
    %141 = arith.shrui %139, %140 : vector<16x128xi32>
    %142 = arith.xori %139, %141 : vector<16x128xi32>
    %c2146121005_i32_42 = arith.constant 2146121005 : i32
    %143 = vector.broadcast %c2146121005_i32_42 : i32 to vector<16x128xi32>
    %144 = arith.muli %142, %143 : vector<16x128xi32>
    %c15_i32_43 = arith.constant 15 : i32
    %145 = vector.broadcast %c15_i32_43 : i32 to vector<16x128xi32>
    %146 = arith.shrui %144, %145 : vector<16x128xi32>
    %147 = arith.xori %144, %146 : vector<16x128xi32>
    %c-2073254261_i32_44 = arith.constant -2073254261 : i32
    %148 = vector.broadcast %c-2073254261_i32_44 : i32 to vector<16x128xi32>
    %149 = arith.muli %147, %148 : vector<16x128xi32>
    %c16_i32_45 = arith.constant 16 : i32
    %150 = vector.broadcast %c16_i32_45 : i32 to vector<16x128xi32>
    %151 = arith.shrui %149, %150 : vector<16x128xi32>
    %152 = arith.xori %149, %151 : vector<16x128xi32>
    %c-429496730_i32_46 = arith.constant -429496730 : i32
    %153 = vector.broadcast %c-429496730_i32_46 : i32 to vector<16x128xi32>
    %154 = arith.cmpi ult, %152, %153 : vector<16x128xi32>
    %cst_47 = arith.constant 1.11111116 : f32
    %155 = vector.broadcast %cst_47 : f32 to vector<16x128xf32>
    %156 = arith.mulf %125, %155 : vector<16x128xf32>
    %cst_48 = arith.constant 0.000000e+00 : f32
    %157 = vector.broadcast %cst_48 : f32 to vector<16x128xf32>
    %158 = arith.select %154, %156, %157 : vector<16x128xi1>, vector<16x128xf32>
    %159 = arith.addf %158, %1 : vector<16x128xf32>
    %cst_49 = arith.constant dense<0.000000e+00> : vector<16xf32>
    %160 = vector.multi_reduction <add>, %159, %cst_49 [1] : vector<16x128xf32> to vector<16xf32>
    %161 = vector.shape_cast %160 : vector<16xf32> to vector<16x1xf32>
    %cst_50 = arith.constant 1.280000e+02 : f32
    %162 = vector.broadcast %cst_50 : f32 to vector<16x1xf32>
    %163 = arith.divf %161, %162 : vector<16x1xf32>
    %164 = vector.broadcast %163 : vector<16x1xf32> to vector<16x128xf32>
    %165 = arith.subf %159, %164 : vector<16x128xf32>
    %166 = arith.mulf %165, %165 : vector<16x128xf32>
    %cst_51 = arith.constant dense<0.000000e+00> : vector<16xf32>
    %167 = vector.multi_reduction <add>, %166, %cst_51 [1] : vector<16x128xf32> to vector<16xf32>
    %168 = vector.shape_cast %167 : vector<16xf32> to vector<16x1xf32>
    %cst_52 = arith.constant 1.280000e+02 : f32
    %169 = vector.broadcast %cst_52 : f32 to vector<16x1xf32>
    %170 = arith.divf %168, %169 : vector<16x1xf32>
    %171 = vector.broadcast %163 : vector<16x1xf32> to vector<16x128xf32>
    %172 = arith.subf %159, %171 : vector<16x128xf32>
    %cst_53 = arith.constant 9.99999974E-6 : f32
    %173 = vector.broadcast %cst_53 : f32 to vector<16x1xf32>
    %174 = arith.addf %170, %173 : vector<16x1xf32>
    %175 = math.rsqrt %174 : vector<16x1xf32>
    %176 = vector.broadcast %175 : vector<16x1xf32> to vector<16x128xf32>
    %177 = arith.mulf %172, %176 : vector<16x128xf32>
    %c0_54 = arith.constant 0 : index
    %c0_55 = arith.constant 0 : index
    %178 = vector.load %arg13[%c0_54, %c0_55] : memref<1x128xf32, #tpu.memory_space<vmem>>, vector<1x128xf32>
    %179 = vector.broadcast %178 : vector<1x128xf32> to vector<16x128xf32>
    %180 = arith.mulf %177, %179 : vector<16x128xf32>
    %c0_56 = arith.constant 0 : index
    %c0_57 = arith.constant 0 : index
    %181 = vector.load %arg14[%c0_56, %c0_57] : memref<1x128xf32, #tpu.memory_space<vmem>>, vector<1x128xf32>
    %182 = vector.broadcast %181 : vector<1x128xf32> to vector<16x128xf32>
    %183 = arith.addf %180, %182 : vector<16x128xf32>
    %c0_58 = arith.constant 0 : index
    %c0_59 = arith.constant 0 : index
    %c0_60 = arith.constant 0 : index
    %184 = vector.load %arg15[%c0_58, %c0_59, %c0_60] : memref<1x16x128xf32, #tpu.memory_space<vmem>>, vector<1x16x128xf32>
    %185 = vector.shape_cast %184 : vector<1x16x128xf32> to vector<16x128xf32>
    %186 = vector.shape_cast %183 : vector<16x128xf32> to vector<1x16x128xf32>
    tpu.vector_store %arg15[%c0_58, %c0_59, %c0_60], %186 {strides = array<i32>} : memref<1x16x128xf32, #tpu.memory_space<vmem>>, vector<1x16x128xf32>,
    return
  }
  func.func @transform_0(%arg0: i32) -> (i32, i32, i32) {
    %c0_i32 = arith.constant 0 : i32
    %c0_i32_0 = arith.constant 0 : i32
    %c0_i32_1 = arith.constant 0 : i32
    return %arg0, %c0_i32, %c0_i32_0 : i32, i32, i32
  }
  func.func @transform_1(%arg0: i32) -> (i32, i32, i32) {
    %c0_i32 = arith.constant 0 : i32
    %c0_i32_0 = arith.constant 0 : i32
    %c0_i32_1 = arith.constant 0 : i32
    return %arg0, %c0_i32, %c0_i32_0 : i32, i32, i32
  }
  func.func @transform_2(%arg0: i32) -> (i32, i32, i32) {
    %c0_i32 = arith.constant 0 : i32
    %c0_i32_0 = arith.constant 0 : i32
    %c0_i32_1 = arith.constant 0 : i32
    return %arg0, %c0_i32, %c0_i32_0 : i32, i32, i32
  }
  func.func @transform_3(%arg0: i32) -> (i32, i32) {
    %c0_i32 = arith.constant 0 : i32
    %c0_i32_0 = arith.constant 0 : i32
    %c0_i32_1 = arith.constant 0 : i32
    return %c0_i32, %c0_i32_0 : i32, i32
  }
  func.func @transform_4(%arg0: i32) -> (i32, i32) {
    %c0_i32 = arith.constant 0 : i32
    %c0_i32_0 = arith.constant 0 : i32
    %c0_i32_1 = arith.constant 0 : i32
    return %c0_i32, %c0_i32_0 : i32, i32
  }
  func.func @transform_5(%arg0: i32) -> (i32, i32) {
    %c0_i32 = arith.constant 0 : i32
    %c0_i32_0 = arith.constant 0 : i32
    %c0_i32_1 = arith.constant 0 : i32
    return %c0_i32, %c0_i32_0 : i32, i32
  }
  func.func @transform_6(%arg0: i32) -> (i32, i32) {
    %c0_i32 = arith.constant 0 : i32
    %c0_i32_0 = arith.constant 0 : i32
    %c0_i32_1 = arith.constant 0 : i32
    return %c0_i32, %c0_i32_0 : i32, i32
  }
  func.func @transform_7(%arg0: i32) -> (i32, i32) {
    %c0_i32 = arith.constant 0 : i32
    %c0_i32_0 = arith.constant 0 : i32
    %c0_i32_1 = arith.constant 0 : i32
    return %c0_i32, %c0_i32_0 : i32, i32
  }
  func.func @transform_8(%arg0: i32) -> (i32, i32) {
    %c0_i32 = arith.constant 0 : i32
    %c0_i32_0 = arith.constant 0 : i32
    %c0_i32_1 = arith.constant 0 : i32
    return %c0_i32, %c0_i32_0 : i32, i32
  }
  func.func @transform_9(%arg0: i32) -> (i32, i32) {
    %c0_i32 = arith.constant 0 : i32
    %c0_i32_0 = arith.constant 0 : i32
    %c0_i32_1 = arith.constant 0 : i32
    return %c0_i32, %c0_i32_0 : i32, i32
  }
  func.func @transform_10(%arg0: i32) -> (i32, i32) {
    %c0_i32 = arith.constant 0 : i32
    %c0_i32_0 = arith.constant 0 : i32
    %c0_i32_1 = arith.constant 0 : i32
    return %c0_i32, %c0_i32_0 : i32, i32
  }
  func.func @transform_11(%arg0: i32) -> (i32, i32) {
    %c0_i32 = arith.constant 0 : i32
    %c0_i32_0 = arith.constant 0 : i32
    %c0_i32_1 = arith.constant 0 : i32
    return %c0_i32, %c0_i32_0 : i32, i32
  }
  func.func @transform_12(%arg0: i32) -> (i32, i32) {
    %c0_i32 = arith.constant 0 : i32
    %c0_i32_0 = arith.constant 0 : i32
    %c0_i32_1 = arith.constant 0 : i32
    return %c0_i32, %c0_i32_0 : i32, i32
  }
  func.func @transform_13(%arg0: i32) -> (i32, i32) {
    %c0_i32 = arith.constant 0 : i32
    %c0_i32_0 = arith.constant 0 : i32
    %c0_i32_1 = arith.constant 0 : i32
    return %c0_i32, %c0_i32_0 : i32, i32
  }
  func.func @transform_14(%arg0: i32) -> (i32, i32, i32) {
    %c0_i32 = arith.constant 0 : i32
    %c0_i32_0 = arith.constant 0 : i32
    %c0_i32_1 = arith.constant 0 : i32
    return %arg0, %c0_i32, %c0_i32_0 : i32, i32, i32
  }
}

</mosaic_0001>

<llo_original>
// kernel: tpu_custom_call.1
$region0: #{tpu_custom_call.1}
  #allocation0 [shape = 'u32[]', space=smem, size = 0x4, offset = 0x4, fixed_abs, tag = 'smem constant byte address 0x4 - core index']
  #allocation1 [shape = 'u32[144,128]{1,0:T(1,128)}', space=vmem, size = 0x12000, scoped, tag = 'internal scratch']
  %s0 = inlined_call_operand.hbm [shape: f32[2,16,128], index: 0, kind: input, shape index: {}]
  %s1 = inlined_call_operand.hbm [shape: f32[2,16,128], index: 1, kind: input, shape index: {}]
  %s2 = inlined_call_operand.hbm [shape: f32[2,16,128], index: 2, kind: input, shape index: {}]
  %s3 = inlined_call_operand.hbm [shape: f32[16,16], index: 3, kind: input, shape index: {}]
  %s4 = inlined_call_operand.hbm [shape: bf16[128,128], index: 4, kind: input, shape index: {}]
  %s5 = inlined_call_operand.vmem [shape: f32[1,128], index: 5, kind: input, shape index: {}]
  %s6 = inlined_call_operand.hbm [shape: bf16[128,128], index: 6, kind: input, shape index: {}]
  %s7 = inlined_call_operand.vmem [shape: f32[1,128], index: 7, kind: input, shape index: {}]
  %s8 = inlined_call_operand.hbm [shape: bf16[128,128], index: 8, kind: input, shape index: {}]
  %s9 = inlined_call_operand.vmem [shape: f32[1,128], index: 9, kind: input, shape index: {}]
  %s10 = inlined_call_operand.hbm [shape: bf16[128,128], index: 10, kind: input, shape index: {}]
  %s11 = inlined_call_operand.vmem [shape: f32[1,128], index: 11, kind: input, shape index: {}]
  %s12 = inlined_call_operand.vmem [shape: f32[1,128], index: 12, kind: input, shape index: {}]
  %s13 = inlined_call_operand.vmem [shape: f32[1,128], index: 13, kind: input, shape index: {}]
  %s14 = inlined_call_operand.hbm [shape: f32[2,16,128], index: 14, kind: output, shape index: {}]
  %s15 = sld [smem:[#allocation0]]
  $region121: #{tpu_custom_call.1} parent=0
    _
  %s17 = ssub.s32 1, %s15
  %s18 = scalar_select 0, %s17, %s15
  $region1: #{tpu_custom_call.1} parent=0
    #allocation2 [shape = 'u8[16384]{0}', space=vmem, size = 0x4000, scoped, tag = 'input window, operand 0']
    #allocation3 [shape = 's32[2]{0}', space=sflag, size = 0x8, scoped, tag = 'scoped memory for tpu_custom_call.1']
    #allocation4 [shape = 's32[2]{0}', space=sflag, size = 0x8, scoped, tag = 'scoped memory for tpu_custom_call.1']
    #allocation5 [shape = 'u8[16384]{0}', space=vmem, size = 0x4000, scoped, tag = 'input window, operand 1']
    #allocation6 [shape = 's32[2]{0}', space=sflag, size = 0x8, scoped, tag = 'scoped memory for tpu_custom_call.1']
    #allocation7 [shape = 'u8[16384]{0}', space=vmem, size = 0x4000, scoped, tag = 'input window, operand 2']
    #allocation8 [shape = 'u8[8192]{0}', space=vmem, size = 0x2000, scoped, tag = 'input window, operand 3, single buffered']
    #allocation9 [shape = 's32[1]{0}', space=sflag, size = 0x4, scoped, tag = 'scoped memory for tpu_custom_call.1']
    #allocation10 [shape = 'u8[32768]{0}', space=vmem, size = 0x8000, scoped, tag = 'input window, operand 4, single buffered']
    #allocation11 [shape = 'u8[32768]{0}', space=vmem, size = 0x8000, scoped, tag = 'input window, operand 6, single buffered']
    #allocation12 [shape = 's32[1]{0}', space=sflag, size = 0x4, scoped, tag = 'scoped memory for tpu_custom_call.1']
    #allocation13 [shape = 'u8[32768]{0}', space=vmem, size = 0x8000, scoped, tag = 'input window, operand 8, single buffered']
    #allocation14 [shape = 'u8[32768]{0}', space=vmem, size = 0x8000, scoped, tag = 'input window, operand 10, single buffered']
    #allocation15 [shape = 's32[1]{0}', space=sflag, size = 0x4, scoped, tag = 'scoped memory for tpu_custom_call.1']
    #allocation16 [shape = 'u8[16384]{0}', space=vmem, size = 0x4000, scoped, tag = 'output window, operand 0']
    %19 = vsyncpa [#allocation3], 0
    %s20 = scalar_lea.sflag [#allocation3], 1
    %21 = vsyncpa %s20, 0
    %22 = vsyncpa [#allocation6], 0
    %s23 = scalar_lea.sflag [#allocation6], 1
    %24 = vsyncpa %s23, 0
    %25 = vsyncpa [#allocation9], 0
    %26 = vsyncpa [#allocation12], 0
    %27 = vsyncpa [#allocation15], 0
    %28 = vsyncpa [#allocation4], 0
    %s29 = scalar_lea.sflag [#allocation4], 1
    %30 = vsyncpa %s29, 0
    loop: start=0, step=1, limit=4
    $region2: #{tpu_custom_call.1} parent=1 // loop_pre_header
      _
    $region3: #{tpu_custom_call.1} parent=1 // loop_header
      %s32 = sphi 0, %s36
      %p33 = scmp.ge.s32.totalorder %s32, 4
      %s42 = sphi 0, %s44
      %s45 = sphi 0, %s42
      %s46 = sphi 0, %s45
      %s62 = sphi 0, %s46
      %s68 = sphi 0, %s70
      %s71 = sphi 0, %s68
      %s72 = sphi 0, %s71
      %s88 = sphi 0, %s72
      %s94 = sphi 0, %s96
      %s97 = sphi 0, %s94
      %s98 = sphi 0, %s97
      %s114 = sphi 0, %s98
      %s118 = sphi 0, %s118
      %s120 = sphi 0, %s118
      %s121 = sphi 0, %s120
      %s135 = sphi 0, %s121
      %s139 = sphi 0, %s139
      %s141 = sphi 0, %s139
      %s142 = sphi 0, %s141
      %s156 = sphi 0, %s142
      %s160 = sphi 0, %s160
      %s162 = sphi 0, %s160
      %s163 = sphi 0, %s162
      %s177 = sphi 0, %s163
      %s181 = sphi 0, %s181
      %s183 = sphi 0, %s181
      %s184 = sphi 0, %s183
      %s198 = sphi 0, %s184
      %s202 = sphi 0, %s202
      %s204 = sphi 0, %s202
      %s205 = sphi 0, %s204
      %s219 = sphi 0, %s205
      %s223 = sphi 0, %s223
      %s225 = sphi 0, %s223
      %s226 = sphi 0, %s225
      %s240 = sphi 0, %s226
      %s244 = sphi 0, %s244
      %s246 = sphi 0, %s244
      %s247 = sphi 0, %s246
      %s261 = sphi 0, %s247
      %s265 = sphi 0, %s265
      %s267 = sphi 0, %s265
      %s268 = sphi 0, %s267
      %s282 = sphi 0, %s268
      %s286 = sphi 0, %s286
      %s288 = sphi 0, %s286
      %s289 = sphi 0, %s288
      %s303 = sphi 0, %s289
      %s307 = sphi 0, %s307
      %s309 = sphi 0, %s307
      %s310 = sphi 0, %s309
      %s324 = sphi 0, %s310
      %s328 = sphi 0, %s328
      %s330 = sphi 0, %s328
      %s331 = sphi 0, %s330
      %s345 = sphi 0, %s331
      %s351 = sphi 0, %s353
      %s354 = sphi 0, %s351
      %s355 = sphi 0, %s354
      %s371 = sphi 0, %s355
    $region4: #{tpu_custom_call.1} parent=1 // loop_header_branch
      %35 = sbr.rel (%p33) target = $region8
    $region5: #{tpu_custom_call.1} parent=1 // loop_body
      %s37 = ssub.s32 %s32, 1
      %s38 = ssub.s32 %s32, 2
      %s39 = sadd.s32 %s32, 1
      %s40 = ssub.s32 %s32, %s39
      %p41 = scmp.eq.s32.totalorder %s40, 0
      %s43 = sadd.s32 %s42, 1
      %s44 = scalar_select %p41, %s42, %s43
      %p47 = pneg %p41
      %p48 = scmp.eq.s32.totalorder %s32, 1
      %p49 = por %p47, %p48
      %p50 = scmp.ne.s32.totalorder %s42, %s45
      %p51 = scmp.eq.s32.totalorder %s32, 0
      %p52 = por %p50, %p51
      %p53 = scmp.ne.s32.totalorder %s42, %s45
      %p54 = scmp.eq.s32.totalorder %s37, 1
      %p55 = por %p53, %p54
      %p56 = scmp.ne.s32.totalorder %s45, %s46
      %p57 = scmp.eq.s32.totalorder %s37, 0
      %p58 = por %p56, %p57
      %p59 = scmp.ne.s32.totalorder %s45, %s46
      %p60 = scmp.eq.s32.totalorder %s38, 1
      %p61 = por %p59, %p60
      %p63 = scmp.ne.s32.totalorder %s46, %s62
      %p64 = scmp.eq.s32.totalorder %s38, 0
      %p65 = por %p63, %p64
      %s66 = ssub.s32 %s32, %s39
      %p67 = scmp.eq.s32.totalorder %s66, 0
      %s69 = sadd.s32 %s68, 1
      %s70 = scalar_select %p67, %s68, %s69
      %p73 = pneg %p67
      %p74 = scmp.eq.s32.totalorder %s32, 1
      %p75 = por %p73, %p74
      %p76 = scmp.ne.s32.totalorder %s68, %s71
      %p77 = scmp.eq.s32.totalorder %s32, 0
      %p78 = por %p76, %p77
      %p79 = scmp.ne.s32.totalorder %s68, %s71
      %p80 = scmp.eq.s32.totalorder %s37, 1
      %p81 = por %p79, %p80
      %p82 = scmp.ne.s32.totalorder %s71, %s72
      %p83 = scmp.eq.s32.totalorder %s37, 0
      %p84 = por %p82, %p83
      %p85 = scmp.ne.s32.totalorder %s71, %s72
      %p86 = scmp.eq.s32.totalorder %s38, 1
      %p87 = por %p85, %p86
      %p89 = scmp.ne.s32.totalorder %s72, %s88
      %p90 = scmp.eq.s32.totalorder %s38, 0
      %p91 = por %p89, %p90
      %s92 = ssub.s32 %s32, %s39
      %p93 = scmp.eq.s32.totalorder %s92, 0
      %s95 = sadd.s32 %s94, 1
      %s96 = scalar_select %p93, %s94, %s95
      %p99 = pneg %p93
      %p100 = scmp.eq.s32.totalorder %s32, 1
      %p101 = por %p99, %p100
      %p102 = scmp.ne.s32.totalorder %s94, %s97
      %p103 = scmp.eq.s32.totalorder %s32, 0
      %p104 = por %p102, %p103
      %p105 = scmp.ne.s32.totalorder %s94, %s97
      %p106 = scmp.eq.s32.totalorder %s37, 1
      %p107 = por %p105, %p106
      %p108 = scmp.ne.s32.totalorder %s97, %s98
      %p109 = scmp.eq.s32.totalorder %s37, 0
      %p110 = por %p108, %p109
      %p111 = scmp.ne.s32.totalorder %s97, %s98
      %p112 = scmp.eq.s32.totalorder %s38, 1
      %p113 = por %p111, %p112
      %p115 = scmp.ne.s32.totalorder %s98, %s114
      %p116 = scmp.eq.s32.totalorder %s38, 0
      %p117 = por %p115, %p116
      %s119 = sadd.s32 %s118, 1
      %p122 = scmp.eq.s32.totalorder %s32, 1
      %p123 = scmp.ne.s32.totalorder %s118, %s120
      %p124 = scmp.eq.s32.totalorder %s32, 0
      %p125 = por %p123, %p124
      %p126 = scmp.ne.s32.totalorder %s118, %s120
      %p127 = scmp.eq.s32.totalorder %s37, 1
      %p128 = por %p126, %p127
      %p129 = scmp.ne.s32.totalorder %s120, %s121
      %p130 = scmp.eq.s32.totalorder %s37, 0
      %p131 = por %p129, %p130
      %p132 = scmp.ne.s32.totalorder %s120, %s121
      %p133 = scmp.eq.s32.totalorder %s38, 1
      %p134 = por %p132, %p133
      %p136 = scmp.ne.s32.totalorder %s121, %s135
      %p137 = scmp.eq.s32.totalorder %s38, 0
      %p138 = por %p136, %p137
      %s140 = sadd.s32 %s139, 1
      %p143 = scmp.eq.s32.totalorder %s32, 1
      %p144 = scmp.ne.s32.totalorder %s139, %s141
      %p145 = scmp.eq.s32.totalorder %s32, 0
      %p146 = por %p144, %p145
      %p147 = scmp.ne.s32.totalorder %s139, %s141
      %p148 = scmp.eq.s32.totalorder %s37, 1
      %p149 = por %p147, %p148
      %p150 = scmp.ne.s32.totalorder %s141, %s142
      %p151 = scmp.eq.s32.totalorder %s37, 0
      %p152 = por %p150, %p151
      %p153 = scmp.ne.s32.totalorder %s141, %s142
      %p154 = scmp.eq.s32.totalorder %s38, 1
      %p155 = por %p153, %p154
      %p157 = scmp.ne.s32.totalorder %s142, %s156
      %p158 = scmp.eq.s32.totalorder %s38, 0
      %p159 = por %p157, %p158
      %s161 = sadd.s32 %s160, 1
      %p164 = scmp.eq.s32.totalorder %s32, 1
      %p165 = scmp.ne.s32.totalorder %s160, %s162
      %p166 = scmp.eq.s32.totalorder %s32, 0
      %p167 = por %p165, %p166
      %p168 = scmp.ne.s32.totalorder %s160, %s162
      %p169 = scmp.eq.s32.totalorder %s37, 1
      %p170 = por %p168, %p169
      %p171 = scmp.ne.s32.totalorder %s162, %s163
      %p172 = scmp.eq.s32.totalorder %s37, 0
      %p173 = por %p171, %p172
      %p174 = scmp.ne.s32.totalorder %s162, %s163
      %p175 = scmp.eq.s32.totalorder %s38, 1
      %p176 = por %p174, %p175
      %p178 = scmp.ne.s32.totalorder %s163, %s177
      %p179 = scmp.eq.s32.totalorder %s38, 0
      %p180 = por %p178, %p179
      %s182 = sadd.s32 %s181, 1
      %p185 = scmp.eq.s32.totalorder %s32, 1
      %p186 = scmp.ne.s32.totalorder %s181, %s183
      %p187 = scmp.eq.s32.totalorder %s32, 0
      %p188 = por %p186, %p187
      %p189 = scmp.ne.s32.totalorder %s181, %s183
      %p190 = scmp.eq.s32.totalorder %s37, 1
      %p191 = por %p189, %p190
      %p192 = scmp.ne.s32.totalorder %s183, %s184
      %p193 = scmp.eq.s32.totalorder %s37, 0
      %p194 = por %p192, %p193
      %p195 = scmp.ne.s32.totalorder %s183, %s184
      %p196 = scmp.eq.s32.totalorder %s38, 1
      %p197 = por %p195, %p196
      %p199 = scmp.ne.s32.totalorder %s184, %s198
      %p200 = scmp.eq.s32.totalorder %s38, 0
      %p201 = por %p199, %p200
      %s203 = sadd.s32 %s202, 1
      %p206 = scmp.eq.s32.totalorder %s32, 1
      %p207 = scmp.ne.s32.totalorder %s202, %s204
      %p208 = scmp.eq.s32.totalorder %s32, 0
      %p209 = por %p207, %p208
      %p210 = scmp.ne.s32.totalorder %s202, %s204
      %p211 = scmp.eq.s32.totalorder %s37, 1
      %p212 = por %p210, %p211
      %p213 = scmp.ne.s32.totalorder %s204, %s205
      %p214 = scmp.eq.s32.totalorder %s37, 0
      %p215 = por %p213, %p214
      %p216 = scmp.ne.s32.totalorder %s204, %s205
      %p217 = scmp.eq.s32.totalorder %s38, 1
      %p218 = por %p216, %p217
      %p220 = scmp.ne.s32.totalorder %s205, %s219
      %p221 = scmp.eq.s32.totalorder %s38, 0
      %p222 = por %p220, %p221
      %s224 = sadd.s32 %s223, 1
      %p227 = scmp.eq.s32.totalorder %s32, 1
      %p228 = scmp.ne.s32.totalorder %s223, %s225
      %p229 = scmp.eq.s32.totalorder %s32, 0
      %p230 = por %p228, %p229
      %p231 = scmp.ne.s32.totalorder %s223, %s225
      %p232 = scmp.eq.s32.totalorder %s37, 1
      %p233 = por %p231, %p232
      %p234 = scmp.ne.s32.totalorder %s225, %s226
      %p235 = scmp.eq.s32.totalorder %s37, 0
      %p236 = por %p234, %p235
      %p237 = scmp.ne.s32.totalorder %s225, %s226
      %p238 = scmp.eq.s32.totalorder %s38, 1
      %p239 = por %p237, %p238
      %p241 = scmp.ne.s32.totalorder %s226, %s240
      %p242 = scmp.eq.s32.totalorder %s38, 0
      %p243 = por %p241, %p242
      %s245 = sadd.s32 %s244, 1
      %p248 = scmp.eq.s32.totalorder %s32, 1
      %p249 = scmp.ne.s32.totalorder %s244, %s246
      %p250 = scmp.eq.s32.totalorder %s32, 0
      %p251 = por %p249, %p250
      %p252 = scmp.ne.s32.totalorder %s244, %s246
      %p253 = scmp.eq.s32.totalorder %s37, 1
      %p254 = por %p252, %p253
      %p255 = scmp.ne.s32.totalorder %s246, %s247
      %p256 = scmp.eq.s32.totalorder %s37, 0
      %p257 = por %p255, %p256
      %p258 = scmp.ne.s32.totalorder %s246, %s247
      %p259 = scmp.eq.s32.totalorder %s38, 1
      %p260 = por %p258, %p259
      %p262 = scmp.ne.s32.totalorder %s247, %s261
      %p263 = scmp.eq.s32.totalorder %s38, 0
      %p264 = por %p262, %p263
      %s266 = sadd.s32 %s265, 1
      %p269 = scmp.eq.s32.totalorder %s32, 1
      %p270 = scmp.ne.s32.totalorder %s265, %s267
      %p271 = scmp.eq.s32.totalorder %s32, 0
      %p272 = por %p270, %p271
      %p273 = scmp.ne.s32.totalorder %s265, %s267
      %p274 = scmp.eq.s32.totalorder %s37, 1
      %p275 = por %p273, %p274
      %p276 = scmp.ne.s32.totalorder %s267, %s268
      %p277 = scmp.eq.s32.totalorder %s37, 0
      %p278 = por %p276, %p277
      %p279 = scmp.ne.s32.totalorder %s267, %s268
      %p280 = scmp.eq.s32.totalorder %s38, 1
      %p281 = por %p279, %p280
      %p283 = scmp.ne.s32.totalorder %s268, %s282
      %p284 = scmp.eq.s32.totalorder %s38, 0
      %p285 = por %p283, %p284
      %s287 = sadd.s32 %s286, 1
      %p290 = scmp.eq.s32.totalorder %s32, 1
      %p291 = scmp.ne.s32.totalorder %s286, %s288
      %p292 = scmp.eq.s32.totalorder %s32, 0
      %p293 = por %p291, %p292
      %p294 = scmp.ne.s32.totalorder %s286, %s288
      %p295 = scmp.eq.s32.totalorder %s37, 1
      %p296 = por %p294, %p295
      %p297 = scmp.ne.s32.totalorder %s288, %s289
      %p298 = scmp.eq.s32.totalorder %s37, 0
      %p299 = por %p297, %p298
      %p300 = scmp.ne.s32.totalorder %s288, %s289
      %p301 = scmp.eq.s32.totalorder %s38, 1
      %p302 = por %p300, %p301
      %p304 = scmp.ne.s32.totalorder %s289, %s303
      %p305 = scmp.eq.s32.totalorder %s38, 0
      %p306 = por %p304, %p305
      %s308 = sadd.s32 %s307, 1
      %p311 = scmp.eq.s32.totalorder %s32, 1
      %p312 = scmp.ne.s32.totalorder %s307, %s309
      %p313 = scmp.eq.s32.totalorder %s32, 0
      %p314 = por %p312, %p313
      %p315 = scmp.ne.s32.totalorder %s307, %s309
      %p316 = scmp.eq.s32.totalorder %s37, 1
      %p317 = por %p315, %p316
      %p318 = scmp.ne.s32.totalorder %s309, %s310
      %p319 = scmp.eq.s32.totalorder %s37, 0
      %p320 = por %p318, %p319
      %p321 = scmp.ne.s32.totalorder %s309, %s310
      %p322 = scmp.eq.s32.totalorder %s38, 1
      %p323 = por %p321, %p322
      %p325 = scmp.ne.s32.totalorder %s310, %s324
      %p326 = scmp.eq.s32.totalorder %s38, 0
      %p327 = por %p325, %p326
      %s329 = sadd.s32 %s328, 1
      %p332 = scmp.eq.s32.totalorder %s32, 1
      %p333 = scmp.ne.s32.totalorder %s328, %s330
      %p334 = scmp.eq.s32.totalorder %s32, 0
      %p335 = por %p333, %p334
      %p336 = scmp.ne.s32.totalorder %s328, %s330
      %p337 = scmp.eq.s32.totalorder %s37, 1
      %p338 = por %p336, %p337
      %p339 = scmp.ne.s32.totalorder %s330, %s331
      %p340 = scmp.eq.s32.totalorder %s37, 0
      %p341 = por %p339, %p340
      %p342 = scmp.ne.s32.totalorder %s330, %s331
      %p343 = scmp.eq.s32.totalorder %s38, 1
      %p344 = por %p342, %p343
      %p346 = scmp.ne.s32.totalorder %s331, %s345
      %p347 = scmp.eq.s32.totalorder %s38, 0
      %p348 = por %p346, %p347
      %s349 = ssub.s32 %s32, %s39
      %p350 = scmp.eq.s32.totalorder %s349, 0
      %s352 = sadd.s32 %s351, 1
      %s353 = scalar_select %p350, %s351, %s352
      %p356 = pneg %p350
      %p357 = scmp.eq.s32.totalorder %s32, 1
      %p358 = por %p356, %p357
      %p359 = scmp.ne.s32.totalorder %s351, %s354
      %p360 = scmp.eq.s32.totalorder %s32, 0
      %p361 = por %p359, %p360
      %p362 = scmp.ne.s32.totalorder %s351, %s354
      %p363 = scmp.eq.s32.totalorder %s37, 1
      %p364 = por %p362, %p363
      %p365 = scmp.ne.s32.totalorder %s354, %s355
      %p366 = scmp.eq.s32.totalorder %s37, 0
      %p367 = por %p365, %p366
      %p368 = scmp.ne.s32.totalorder %s354, %s355
      %p369 = scmp.eq.s32.totalorder %s38, 1
      %p370 = por %p368, %p369
      %p372 = scmp.ne.s32.totalorder %s355, %s371
      %p373 = scmp.eq.s32.totalorder %s38, 0
      %p374 = por %p372, %p373
      %p375 = scmp.le.s32.totalorder 1, %s32
      %p376 = scmp.lt.s32.totalorder %s32, 3
      %p377 = pnand %p375, %p376
      %p378 = pneg %p377
      // Predicated region
      $region9: #{tpu_custom_call.1} parent=5 // pred_check
        _
      $region10: #{tpu_custom_call.1} parent=5 // pred_check_branch
        %380 = sbr.rel (%p377) target = $region12
      $region11: #{tpu_custom_call.1} parent=5 // pred_region
        %s381 = ssub.s32 %s32, 1
        // Predicated region
        $region13: #{tpu_custom_call.1} parent=11 // pred_check
          %p382 = pneg %p131
        $region14: #{tpu_custom_call.1} parent=11 // pred_check_branch
          %384 = sbr.rel (%p382) target = $region16
        $region15: #{tpu_custom_call.1} parent=11 // pred_region
          %s386 = ssub.s32 256, 256
          %387 = vsyncadd [#allocation9], %s386
          %s388 = sshll.u32 [#allocation8], 4
          %s389 = int_to_ptr.vmem [resolvable:$true] %s388
          %394 = dma.hbm_to_vmem [thread:$0]  %s3, 256, %s389, [#allocation9], 128, 128, 8
        $region16: #{tpu_custom_call.1} parent=11 // pred_fallthru
          _
        // Predicated region
        $region17: #{tpu_custom_call.1} parent=11 // pred_check
          %p395 = pneg %p152
        $region18: #{tpu_custom_call.1} parent=11 // pred_check_branch
          %397 = sbr.rel (%p395) target = $region20
        $region19: #{tpu_custom_call.1} parent=11 // pred_region
          %s399 = ssub.s32 1024, 1024
          %400 = vsyncadd [#allocation9], %s399
          %s401 = sshll.u32 [#allocation10], 4
          %s402 = int_to_ptr.vmem [resolvable:$true] %s401
          %407 = dma.hbm_to_vmem [thread:$0]  %s4, 1024, %s402, [#allocation9], 64, 64, 4
        $region20: #{tpu_custom_call.1} parent=11 // pred_fallthru
          _
        // Predicated region
        $region21: #{tpu_custom_call.1} parent=11 // pred_check
          %p408 = pneg %p173
        $region22: #{tpu_custom_call.1} parent=11 // pred_check_branch
          %410 = sbr.rel (%p408) target = $region24
        $region23: #{tpu_custom_call.1} parent=11 // pred_region
          _
        $region24: #{tpu_custom_call.1} parent=11 // pred_fallthru
          _
        // Predicated region
        $region25: #{tpu_custom_call.1} parent=11 // pred_check
          %p411 = pneg %p194
        $region26: #{tpu_custom_call.1} parent=11 // pred_check_branch
          %413 = sbr.rel (%p411) target = $region28
        $region27: #{tpu_custom_call.1} parent=11 // pred_region
          %s415 = ssub.s32 1024, 1024
          %416 = vsyncadd [#allocation12], %s415
          %s417 = sshll.u32 [#allocation11], 4
          %s418 = int_to_ptr.vmem [resolvable:$true] %s417
          %423 = dma.hbm_to_vmem [thread:$0]  %s6, 1024, %s418, [#allocation12], 64, 64, 4
        $region28: #{tpu_custom_call.1} parent=11 // pred_fallthru
          _
        // Predicated region
        $region29: #{tpu_custom_call.1} parent=11 // pred_check
          %p424 = pneg %p215
        $region30: #{tpu_custom_call.1} parent=11 // pred_check_branch
          %426 = sbr.rel (%p424) target = $region32
        $region31: #{tpu_custom_call.1} parent=11 // pred_region
          _
        $region32: #{tpu_custom_call.1} parent=11 // pred_fallthru
          _
        // Predicated region
        $region33: #{tpu_custom_call.1} parent=11 // pred_check
          %p427 = pneg %p236
        $region34: #{tpu_custom_call.1} parent=11 // pred_check_branch
          %429 = sbr.rel (%p427) target = $region36
        $region35: #{tpu_custom_call.1} parent=11 // pred_region
          %s431 = ssub.s32 1024, 1024
          %432 = vsyncadd [#allocation12], %s431
          %s433 = sshll.u32 [#allocation13], 4
          %s434 = int_to_ptr.vmem [resolvable:$true] %s433
          %439 = dma.hbm_to_vmem [thread:$0]  %s8, 1024, %s434, [#allocation12], 64, 64, 4
        $region36: #{tpu_custom_call.1} parent=11 // pred_fallthru
          _
        // Predicated region
        $region37: #{tpu_custom_call.1} parent=11 // pred_check
          %p440 = pneg %p257
        $region38: #{tpu_custom_call.1} parent=11 // pred_check_branch
          %442 = sbr.rel (%p440) target = $region40
        $region39: #{tpu_custom_call.1} parent=11 // pred_region
          _
        $region40: #{tpu_custom_call.1} parent=11 // pred_fallthru
          _
        // Predicated region
        $region41: #{tpu_custom_call.1} parent=11 // pred_check
          %p443 = pneg %p278
        $region42: #{tpu_custom_call.1} parent=11 // pred_check_branch
          %445 = sbr.rel (%p443) target = $region44
        $region43: #{tpu_custom_call.1} parent=11 // pred_region
          %s447 = ssub.s32 1024, 1024
          %448 = vsyncadd [#allocation15], %s447
          %s449 = sshll.u32 [#allocation14], 4
          %s450 = int_to_ptr.vmem [resolvable:$true] %s449
          %455 = dma.hbm_to_vmem [thread:$0]  %s10, 1024, %s450, [#allocation15], 64, 64, 4
        $region44: #{tpu_custom_call.1} parent=11 // pred_fallthru
          _
        // Predicated region
        $region45: #{tpu_custom_call.1} parent=11 // pred_check
          %p456 = pneg %p299
        $region46: #{tpu_custom_call.1} parent=11 // pred_check_branch
          %458 = sbr.rel (%p456) target = $region48
        $region47: #{tpu_custom_call.1} parent=11 // pred_region
          _
        $region48: #{tpu_custom_call.1} parent=11 // pred_fallthru
          _
        // Predicated region
        $region49: #{tpu_custom_call.1} parent=11 // pred_check
          %p459 = pneg %p320
        $region50: #{tpu_custom_call.1} parent=11 // pred_check_branch
          %461 = sbr.rel (%p459) target = $region52
        $region51: #{tpu_custom_call.1} parent=11 // pred_region
          _
        $region52: #{tpu_custom_call.1} parent=11 // pred_fallthru
          _
        // Predicated region
        $region53: #{tpu_custom_call.1} parent=11 // pred_check
          %p462 = pneg %p341
        $region54: #{tpu_custom_call.1} parent=11 // pred_check_branch
          %464 = sbr.rel (%p462) target = $region56
        $region55: #{tpu_custom_call.1} parent=11 // pred_region
          _
        $region56: #{tpu_custom_call.1} parent=11 // pred_fallthru
          _
      $region12: #{tpu_custom_call.1} parent=5 // pred_fallthru
        _
      %p465 = scmp.lt.s32.totalorder %s32, 2
      // Predicated region
      $region57: #{tpu_custom_call.1} parent=5 // pred_check
        %p466 = pneg %p465
      $region58: #{tpu_custom_call.1} parent=5 // pred_check_branch
        %468 = sbr.rel (%p466) target = $region60
      $region59: #{tpu_custom_call.1} parent=5 // pred_region
        // Predicated region
        $region61: #{tpu_custom_call.1} parent=59 // pred_check
          %p469 = pneg %p52
        $region62: #{tpu_custom_call.1} parent=59 // pred_check_branch
          %471 = sbr.rel (%p469) target = $region64
        $region63: #{tpu_custom_call.1} parent=59 // pred_region
          %s472 = sand.u32 %s42, 1
          %s473 = scalar_lea.sflag [#allocation3], %s472
          %s474 = sand.u32 %s42, 1
          %s475 = smul.addr %s474, 16
          %s476 = scalar_lea.vmem [#allocation2], %s475
          %s478 = ssub.s32 256, 256
          %479 = vsyncadd %s473, %s478
          %s480 = smul.addr %s32, 2
          %s481 = smul.addr %s480, 128
          %s482 = scalar_lea.hbm %s0, %s481
          %s483 = sshll.u32 %s476, 4
          %s484 = int_to_ptr.vmem [resolvable:$true] %s483
          %489 = dma.hbm_to_vmem [thread:$0]  %s482, 256, %s484, %s473, 128, 128, 8
        $region64: #{tpu_custom_call.1} parent=59 // pred_fallthru
          _
        // Predicated region
        $region65: #{tpu_custom_call.1} parent=59 // pred_check
          %p490 = pneg %p78
        $region66: #{tpu_custom_call.1} parent=59 // pred_check_branch
          %492 = sbr.rel (%p490) target = $region68
        $region67: #{tpu_custom_call.1} parent=59 // pred_region
          %s493 = sand.u32 %s32, 1
          %s494 = scalar_lea.sflag [#allocation6], %s493
          %s495 = sand.u32 %s68, 1
          %s496 = smul.addr %s495, 16
          %s497 = scalar_lea.vmem [#allocation5], %s496
          %s499 = ssub.s32 256, 256
          %500 = vsyncadd %s494, %s499
          %s501 = smul.addr %s32, 2
          %s502 = smul.addr %s501, 128
          %s503 = scalar_lea.hbm %s1, %s502
          %s504 = sshll.u32 %s497, 4
          %s505 = int_to_ptr.vmem [resolvable:$true] %s504
          %510 = dma.hbm_to_vmem [thread:$0]  %s503, 256, %s505, %s494, 128, 128, 8
        $region68: #{tpu_custom_call.1} parent=59 // pred_fallthru
          _
        // Predicated region
        $region69: #{tpu_custom_call.1} parent=59 // pred_check
          %p511 = pneg %p104
        $region70: #{tpu_custom_call.1} parent=59 // pred_check_branch
          %513 = sbr.rel (%p511) target = $region72
        $region71: #{tpu_custom_call.1} parent=59 // pred_region
          %s514 = sand.u32 %s32, 1
          %s515 = scalar_lea.sflag [#allocation6], %s514
          %s516 = sand.u32 %s94, 1
          %s517 = smul.addr %s516, 16
          %s518 = scalar_lea.vmem [#allocation7], %s517
          %s520 = ssub.s32 256, 256
          %521 = vsyncadd %s515, %s520
          %s522 = smul.addr %s32, 2
          %s523 = smul.addr %s522, 128
          %s524 = scalar_lea.hbm %s2, %s523
          %s525 = sshll.u32 %s518, 4
          %s526 = int_to_ptr.vmem [resolvable:$true] %s525
          %531 = dma.hbm_to_vmem [thread:$0]  %s524, 256, %s526, %s515, 128, 128, 8
        $region72: #{tpu_custom_call.1} parent=59 // pred_fallthru
          _
      $region60: #{tpu_custom_call.1} parent=5 // pred_fallthru
        _
      %p532 = scmp.le.s32.totalorder 1, %s32
      %p533 = scmp.lt.s32.totalorder %s32, 3
      %p534 = pnand %p532, %p533
      %p535 = pneg %p534
      // Predicated region
      $region73: #{tpu_custom_call.1} parent=5 // pred_check
        _
      $region74: #{tpu_custom_call.1} parent=5 // pred_check_branch
        %537 = sbr.rel (%p534) target = $region76
      $region75: #{tpu_custom_call.1} parent=5 // pred_region
        %s538 = ssub.s32 %s32, 1
        %s539 = sand.u32 %s45, 1
        %s540 = scalar_lea.sflag [#allocation3], %s539
        %s541 = sand.u32 %s45, 1
        %s542 = smul.addr %s541, 16
        %s543 = scalar_lea.vmem [#allocation2], %s542
        // Predicated region
        $region77: #{tpu_custom_call.1} parent=75 // pred_check
          %p544 = pneg %p58
        $region78: #{tpu_custom_call.1} parent=75 // pred_check_branch
          %546 = sbr.rel (%p544) target = $region80
        $region79: #{tpu_custom_call.1} parent=75 // pred_region
          %547 = dma.done %s540, 256
        $region80: #{tpu_custom_call.1} parent=75 // pred_fallthru
          _
        %s548 = sand.u32 %s37, 1
        %s549 = scalar_lea.sflag [#allocation6], %s548
        %s550 = sand.u32 %s71, 1
        %s551 = smul.addr %s550, 16
        %s552 = scalar_lea.vmem [#allocation5], %s551
        // Predicated region
        $region81: #{tpu_custom_call.1} parent=75 // pred_check
          %p553 = pneg %p84
        $region82: #{tpu_custom_call.1} parent=75 // pred_check_branch
          %555 = sbr.rel (%p553) target = $region84
        $region83: #{tpu_custom_call.1} parent=75 // pred_region
          %556 = dma.done %s549, 256
        $region84: #{tpu_custom_call.1} parent=75 // pred_fallthru
          _
        %s557 = sand.u32 %s37, 1
        %s558 = scalar_lea.sflag [#allocation6], %s557
        %s559 = sand.u32 %s97, 1
        %s560 = smul.addr %s559, 16
        %s561 = scalar_lea.vmem [#allocation7], %s560
        // Predicated region
        $region85: #{tpu_custom_call.1} parent=75 // pred_check
          %p562 = pneg %p110
        $region86: #{tpu_custom_call.1} parent=75 // pred_check_branch
          %564 = sbr.rel (%p562) target = $region88
        $region87: #{tpu_custom_call.1} parent=75 // pred_region
          %565 = dma.done %s558, 256
        $region88: #{tpu_custom_call.1} parent=75 // pred_fallthru
          _
        // Predicated region
        $region89: #{tpu_custom_call.1} parent=75 // pred_check
          %p566 = pneg %p131
        $region90: #{tpu_custom_call.1} parent=75 // pred_check_branch
          %568 = sbr.rel (%p566) target = $region92
        $region91: #{tpu_custom_call.1} parent=75 // pred_region
          %569 = dma.done [#allocation9], 256
        $region92: #{tpu_custom_call.1} parent=75 // pred_fallthru
          _
        // Predicated region
        $region93: #{tpu_custom_call.1} parent=75 // pred_check
          %p570 = pneg %p152
        $region94: #{tpu_custom_call.1} parent=75 // pred_check_branch
          %572 = sbr.rel (%p570) target = $region96
        $region95: #{tpu_custom_call.1} parent=75 // pred_region
          %573 = dma.done [#allocation9], 1024
        $region96: #{tpu_custom_call.1} parent=75 // pred_fallthru
          _
        // Predicated region
        $region97: #{tpu_custom_call.1} parent=75 // pred_check
          %p574 = pneg %p194
        $region98: #{tpu_custom_call.1} parent=75 // pred_check_branch
          %576 = sbr.rel (%p574) target = $region100
        $region99: #{tpu_custom_call.1} parent=75 // pred_region
          %577 = dma.done [#allocation12], 1024
        $region100: #{tpu_custom_call.1} parent=75 // pred_fallthru
          _
        // Predicated region
        $region101: #{tpu_custom_call.1} parent=75 // pred_check
          %p578 = pneg %p236
        $region102: #{tpu_custom_call.1} parent=75 // pred_check_branch
          %580 = sbr.rel (%p578) target = $region104
        $region103: #{tpu_custom_call.1} parent=75 // pred_region
          %581 = dma.done [#allocation12], 1024
        $region104: #{tpu_custom_call.1} parent=75 // pred_fallthru
          _
        // Predicated region
        $region105: #{tpu_custom_call.1} parent=75 // pred_check
          %p582 = pneg %p278
        $region106: #{tpu_custom_call.1} parent=75 // pred_check_branch
          %584 = sbr.rel (%p582) target = $region108
        $region107: #{tpu_custom_call.1} parent=75 // pred_region
          %585 = dma.done [#allocation15], 1024
        $region108: #{tpu_custom_call.1} parent=75 // pred_fallthru
          _
        %s586 = sand.u32 %s45, 1
        %s587 = scalar_lea.sflag [#allocation3], %s586
        %s588 = sand.u32 %s45, 1
        %s589 = smul.addr %s588, 16
        %s590 = scalar_lea.vmem [#allocation2], %s589
        %p591 = pneg %p58
        %p592 = pneg %p55
        %s593 = sand.u32 %s37, 1
        %s594 = scalar_lea.sflag [#allocation6], %s593
        %s595 = sand.u32 %s71, 1
        %s596 = smul.addr %s595, 16
        %s597 = scalar_lea.vmem [#allocation5], %s596
        %p598 = pneg %p84
        %p599 = pneg %p81
        %s600 = sand.u32 %s37, 1
        %s601 = scalar_lea.sflag [#allocation6], %s600
        %s602 = sand.u32 %s97, 1
        %s603 = smul.addr %s602, 16
        %s604 = scalar_lea.vmem [#allocation7], %s603
        %p605 = pneg %p110
        %p606 = pneg %p107
        %p607 = pneg %p131
        %p608 = pneg %p128
        %p609 = pneg %p152
        %p610 = pneg %p149
        %p611 = pneg %p173
        %p612 = pneg %p170
        %p613 = pneg %p194
        %p614 = pneg %p191
        %p615 = pneg %p215
        %p616 = pneg %p212
        %p617 = pneg %p236
        %p618 = pneg %p233
        %p619 = pneg %p257
        %p620 = pneg %p254
        %p621 = pneg %p278
        %p622 = pneg %p275
        %p623 = pneg %p299
        %p624 = pneg %p296
        %p625 = pneg %p320
        %p626 = pneg %p317
        %p627 = pneg %p341
        %p628 = pneg %p338
        %p629 = pneg %p367
        %p630 = pneg %p364
        %s631 = sand.u32 %s354, 1
        %s632 = scalar_lea.sflag [#allocation4], %s631
        %s633 = sand.u32 %s354, 1
        %s634 = smul.addr %s633, 16
        %s635 = scalar_lea.vmem [#allocation16], %s634
        %v637 = vld [vmem:[%s543] sm:$0xff]
        %v638 = vld [vmem:[%s543 + $0x8] sm:$0xff]
        %v639 = vld [vmem:[%s552] sm:$0xff]
        %v640 = vld [vmem:[%s552 + $0x8] sm:$0xff]
        %v641 = vld [vmem:[%s561] sm:$0xff]
        %v642 = vld [vmem:[%s561 + $0x8] sm:$0xff]
        %s643 = smul.u32 %s37, 1000003
        %v644 = vpack.c.bf16 %v638, %v637
        %v645 = vld [vmem:[#allocation10] sm:$0xf]
        %v646 = vld [vmem:[#allocation10 + $0x4] sm:$0xf]
        %v647 = vld [vmem:[#allocation10 + $0x8] sm:$0xf]
        %v648 = vld [vmem:[#allocation10 + $0xc] sm:$0xf]
        %v649 = vld [vmem:[#allocation10 + $0x10] sm:$0xf]
        %v650 = vld [vmem:[#allocation10 + $0x14] sm:$0xf]
        %v651 = vld [vmem:[#allocation10 + $0x18] sm:$0xf]
        %v652 = vld [vmem:[#allocation10 + $0x1c] sm:$0xf]
        %v653 = vld [vmem:[#allocation10 + $0x20] sm:$0xf]
        %v654 = vld [vmem:[#allocation10 + $0x24] sm:$0xf]
        %v655 = vld [vmem:[#allocation10 + $0x28] sm:$0xf]
        %v656 = vld [vmem:[#allocation10 + $0x2c] sm:$0xf]
        %v657 = vld [vmem:[#allocation10 + $0x30] sm:$0xf]
        %v658 = vld [vmem:[#allocation10 + $0x34] sm:$0xf]
        %v659 = vld [vmem:[#allocation10 + $0x38] sm:$0xf]
        %v660 = vld [vmem:[#allocation10 + $0x3c] sm:$0xf]
        %v661 = vld [vmem:[%s5] sm:$0x1]
        %v663 = vlaneseq
        %v664 = vshrl.u32 %v663, 7
        %v665 = vsub.s32 0, %v664
        %v666 = vrot.slane %v661, %v665
        %v684 = vunpack.c.l.b16 %v645
        %v685 = vunpack.c.l.b16 %v646
        %v686 = vunpack.c.l.b16 %v647
        %v687 = vunpack.c.l.b16 %v648
        %v688 = vunpack.c.l.b16 %v649
        %v689 = vunpack.c.l.b16 %v650
        %v690 = vunpack.c.l.b16 %v651
        %v691 = vunpack.c.l.b16 %v652
        %v692 = vunpack.c.l.b16 %v653
        %v693 = vunpack.c.l.b16 %v654
        %v694 = vunpack.c.l.b16 %v655
        %v695 = vunpack.c.l.b16 %v656
        %v696 = vunpack.c.l.b16 %v657
        %v697 = vunpack.c.l.b16 %v658
        %v698 = vunpack.c.l.b16 %v659
        %v699 = vunpack.c.l.b16 %v660
        %v700 = vpack.c.b16 %v685, %v684
        %v701 = vpack.c.b16 %v687, %v686
        %v702 = vpack.c.b16 %v689, %v688
        %v703 = vpack.c.b16 %v691, %v690
        %v704 = vpack.c.b16 %v693, %v692
        %v705 = vpack.c.b16 %v695, %v694
        %v706 = vpack.c.b16 %v697, %v696
        %v707 = vpack.c.b16 %v699, %v698
        %716 = vmatprep.subr.bf16.mxu0 0
        %717 = vmatpush1.bf16.msra.mxu0 %v707
        %718 = vmatprep.subr.bf16.mxu0 0
        %719 = vmatpush1.bf16.msra.mxu0 %v706
        %720 = vmatprep.subr.bf16.mxu0 0
        %721 = vmatpush1.bf16.msra.mxu0 %v705
        %722 = vmatprep.subr.bf16.mxu0 0
        %723 = vmatpush1.bf16.msra.mxu0 %v704
        %724 = vmatprep.subr.bf16.mxu0 0
        %725 = vmatpush1.bf16.msra.mxu0 %v703
        %726 = vmatprep.subr.bf16.mxu0 0
        %727 = vmatpush1.bf16.msra.mxu0 %v702
        %728 = vmatprep.subr.bf16.mxu0 0
        %729 = vmatpush1.bf16.msra.mxu0 %v701
        %730 = vmatprep.subr.bf16.mxu0 0
        %731 = vmatpush1.bf16.msra.mxu0 %v700
        %732 = vmatprep.subr.bf16.mxu0 0
        %733 = vmatpush2.bf16.msra.mxu0 0
        %734 = vmatprep.subr.bf16.mxu0 0
        %735 = vmatpush2.bf16.msra.mxu0 0
        %736 = vmatprep.subr.bf16.mxu0 0
        %737 = vmatpush2.bf16.msra.mxu0 0
        %738 = vmatprep.subr.bf16.mxu0 0
        %739 = vmatpush2.bf16.msra.mxu0 0
        %740 = vmatprep.subr.bf16.mxu0 0
        %741 = vmatpush2.bf16.msra.mxu0 0
        %742 = vmatprep.subr.bf16.mxu0 0
        %743 = vmatpush2.bf16.msra.mxu0 0
        %744 = vmatprep.subr.bf16.mxu0 0
        %745 = vmatpush2.bf16.msra.mxu0 0
        %746 = vmatprep.subr.bf16.mxu0 0
        %747 = vmatpush2.bf16.msra.mxu0 0
        %748 = vmatprep.mubr.bf16.mxu0 0
        %749 = vmatmul.mubr.bf16.gmra.mxu0 %v644
        %v750 = vpop.f32.mrf.mxu0
        %v751 = vadd.f32 %v666, %v750
        %v752 = vpop.f32.mrf.mxu0
        %v753 = vpop.f32.mrf.mxu0
        %v754 = vadd.f32 %v666, %v753
        %v755 = vpop.f32.mrf.mxu0
        %756 = vdwg.mxu0
        %v757 = vpack.c.bf16 %v754, %v751
        %v758 = vpack.c.bf16 %v640, %v639
        %v759 = vld [vmem:[#allocation11] sm:$0xf]
        %v760 = vld [vmem:[#allocation11 + $0x4] sm:$0xf]
        %v761 = vld [vmem:[#allocation11 + $0x8] sm:$0xf]
        %v762 = vld [vmem:[#allocation11 + $0xc] sm:$0xf]
        %v763 = vld [vmem:[#allocation11 + $0x10] sm:$0xf]
        %v764 = vld [vmem:[#allocation11 + $0x14] sm:$0xf]
        %v765 = vld [vmem:[#allocation11 + $0x18] sm:$0xf]
        %v766 = vld [vmem:[#allocation11 + $0x1c] sm:$0xf]
        %v767 = vld [vmem:[#allocation11 + $0x20] sm:$0xf]
        %v768 = vld [vmem:[#allocation11 + $0x24] sm:$0xf]
        %v769 = vld [vmem:[#allocation11 + $0x28] sm:$0xf]
        %v770 = vld [vmem:[#allocation11 + $0x2c] sm:$0xf]
        %v771 = vld [vmem:[#allocation11 + $0x30] sm:$0xf]
        %v772 = vld [vmem:[#allocation11 + $0x34] sm:$0xf]
        %v773 = vld [vmem:[#allocation11 + $0x38] sm:$0xf]
        %v774 = vld [vmem:[#allocation11 + $0x3c] sm:$0xf]
        %v775 = vld [vmem:[%s7] sm:$0x1]
        %v777 = vlaneseq
        %v778 = vshrl.u32 %v777, 7
        %v779 = vsub.s32 0, %v778
        %v780 = vrot.slane %v775, %v779
        %v798 = vunpack.c.l.b16 %v759
        %v799 = vunpack.c.l.b16 %v760
        %v800 = vunpack.c.l.b16 %v761
        %v801 = vunpack.c.l.b16 %v762
        %v802 = vunpack.c.l.b16 %v763
        %v803 = vunpack.c.l.b16 %v764
        %v804 = vunpack.c.l.b16 %v765
        %v805 = vunpack.c.l.b16 %v766
        %v806 = vunpack.c.l.b16 %v767
        %v807 = vunpack.c.l.b16 %v768
        %v808 = vunpack.c.l.b16 %v769
        %v809 = vunpack.c.l.b16 %v770
        %v810 = vunpack.c.l.b16 %v771
        %v811 = vunpack.c.l.b16 %v772
        %v812 = vunpack.c.l.b16 %v773
        %v813 = vunpack.c.l.b16 %v774
        %v814 = vpack.c.b16 %v799, %v798
        %v815 = vpack.c.b16 %v801, %v800
        %v816 = vpack.c.b16 %v803, %v802
        %v817 = vpack.c.b16 %v805, %v804
        %v818 = vpack.c.b16 %v807, %v806
        %v819 = vpack.c.b16 %v809, %v808
        %v820 = vpack.c.b16 %v811, %v810
        %v821 = vpack.c.b16 %v813, %v812
        %830 = vmatprep.subr.bf16.mxu0 0
        %831 = vmatpush1.bf16.msra.mxu0 %v821
        %832 = vmatprep.subr.bf16.mxu0 0
        %833 = vmatpush1.bf16.msra.mxu0 %v820
        %834 = vmatprep.subr.bf16.mxu0 0
        %835 = vmatpush1.bf16.msra.mxu0 %v819
        %836 = vmatprep.subr.bf16.mxu0 0
        %837 = vmatpush1.bf16.msra.mxu0 %v818
        %838 = vmatprep.subr.bf16.mxu0 0
        %839 = vmatpush1.bf16.msra.mxu0 %v817
        %840 = vmatprep.subr.bf16.mxu0 0
        %841 = vmatpush1.bf16.msra.mxu0 %v816
        %842 = vmatprep.subr.bf16.mxu0 0
        %843 = vmatpush1.bf16.msra.mxu0 %v815
        %844 = vmatprep.subr.bf16.mxu0 0
        %845 = vmatpush1.bf16.msra.mxu0 %v814
        %846 = vmatprep.subr.bf16.mxu0 0
        %847 = vmatpush2.bf16.msra.mxu0 0
        %848 = vmatprep.subr.bf16.mxu0 0
        %849 = vmatpush2.bf16.msra.mxu0 0
        %850 = vmatprep.subr.bf16.mxu0 0
        %851 = vmatpush2.bf16.msra.mxu0 0
        %852 = vmatprep.subr.bf16.mxu0 0
        %853 = vmatpush2.bf16.msra.mxu0 0
        %854 = vmatprep.subr.bf16.mxu0 0
        %855 = vmatpush2.bf16.msra.mxu0 0
        %856 = vmatprep.subr.bf16.mxu0 0
        %857 = vmatpush2.bf16.msra.mxu0 0
        %858 = vmatprep.subr.bf16.mxu0 0
        %859 = vmatpush2.bf16.msra.mxu0 0
        %860 = vmatprep.subr.bf16.mxu0 0
        %861 = vmatpush2.bf16.msra.mxu0 0
        %862 = vmatprep.mubr.bf16.mxu0 0
        %863 = vmatmul.mubr.bf16.gmra.mxu0 %v758
        %v864 = vpop.f32.mrf.mxu0
        %v865 = vadd.f32 %v780, %v864
        %v866 = vpop.f32.mrf.mxu0
        %v867 = vpop.f32.mrf.mxu0
        %v868 = vadd.f32 %v780, %v867
        %v869 = vpop.f32.mrf.mxu0
        %870 = vdwg.mxu0
        %v871 = vpack.c.bf16 %v868, %v865
        %v872 = vpack.c.bf16 %v642, %v641
        %v873 = vld [vmem:[#allocation13] sm:$0xf]
        %v874 = vld [vmem:[#allocation13 + $0x4] sm:$0xf]
        %v875 = vld [vmem:[#allocation13 + $0x8] sm:$0xf]
        %v876 = vld [vmem:[#allocation13 + $0xc] sm:$0xf]
        %v877 = vld [vmem:[#allocation13 + $0x10] sm:$0xf]
        %v878 = vld [vmem:[#allocation13 + $0x14] sm:$0xf]
        %v879 = vld [vmem:[#allocation13 + $0x18] sm:$0xf]
        %v880 = vld [vmem:[#allocation13 + $0x1c] sm:$0xf]
        %v881 = vld [vmem:[#allocation13 + $0x20] sm:$0xf]
        %v882 = vld [vmem:[#allocation13 + $0x24] sm:$0xf]
        %v883 = vld [vmem:[#allocation13 + $0x28] sm:$0xf]
        %v884 = vld [vmem:[#allocation13 + $0x2c] sm:$0xf]
        %v885 = vld [vmem:[#allocation13 + $0x30] sm:$0xf]
        %v886 = vld [vmem:[#allocation13 + $0x34] sm:$0xf]
        %v887 = vld [vmem:[#allocation13 + $0x38] sm:$0xf]
        %v888 = vld [vmem:[#allocation13 + $0x3c] sm:$0xf]
        %v889 = vld [vmem:[%s9] sm:$0x1]
        %v891 = vlaneseq
        %v892 = vshrl.u32 %v891, 7
        %v893 = vsub.s32 0, %v892
        %v894 = vrot.slane %v889, %v893
        %v912 = vunpack.c.l.b16 %v873
        %v913 = vunpack.c.l.b16 %v874
        %v914 = vunpack.c.l.b16 %v875
        %v915 = vunpack.c.l.b16 %v876
        %v916 = vunpack.c.l.b16 %v877
        %v917 = vunpack.c.l.b16 %v878
        %v918 = vunpack.c.l.b16 %v879
        %v919 = vunpack.c.l.b16 %v880
        %v920 = vunpack.c.l.b16 %v881
        %v921 = vunpack.c.l.b16 %v882
        %v922 = vunpack.c.l.b16 %v883
        %v923 = vunpack.c.l.b16 %v884
        %v924 = vunpack.c.l.b16 %v885
        %v925 = vunpack.c.l.b16 %v886
        %v926 = vunpack.c.l.b16 %v887
        %v927 = vunpack.c.l.b16 %v888
        %v928 = vpack.c.b16 %v913, %v912
        %v929 = vpack.c.b16 %v915, %v914
        %v930 = vpack.c.b16 %v917, %v916
        %v931 = vpack.c.b16 %v919, %v918
        %v932 = vpack.c.b16 %v921, %v920
        %v933 = vpack.c.b16 %v923, %v922
        %v934 = vpack.c.b16 %v925, %v924
        %v935 = vpack.c.b16 %v927, %v926
        %944 = vmatprep.subr.bf16.mxu0 0
        %945 = vmatpush1.bf16.msra.mxu0 %v935
        %946 = vmatprep.subr.bf16.mxu0 0
        %947 = vmatpush1.bf16.msra.mxu0 %v934
        %948 = vmatprep.subr.bf16.mxu0 0
        %949 = vmatpush1.bf16.msra.mxu0 %v933
        %950 = vmatprep.subr.bf16.mxu0 0
        %951 = vmatpush1.bf16.msra.mxu0 %v932
        %952 = vmatprep.subr.bf16.mxu0 0
        %953 = vmatpush1.bf16.msra.mxu0 %v931
        %954 = vmatprep.subr.bf16.mxu0 0
        %955 = vmatpush1.bf16.msra.mxu0 %v930
        %956 = vmatprep.subr.bf16.mxu0 0
        %957 = vmatpush1.bf16.msra.mxu0 %v929
        %958 = vmatprep.subr.bf16.mxu0 0
        %959 = vmatpush1.bf16.msra.mxu0 %v928
        %960 = vmatprep.subr.bf16.mxu0 0
        %961 = vmatpush2.bf16.msra.mxu0 0
        %962 = vmatprep.subr.bf16.mxu0 0
        %963 = vmatpush2.bf16.msra.mxu0 0
        %964 = vmatprep.subr.bf16.mxu0 0
        %965 = vmatpush2.bf16.msra.mxu0 0
        %966 = vmatprep.subr.bf16.mxu0 0
        %967 = vmatpush2.bf16.msra.mxu0 0
        %968 = vmatprep.subr.bf16.mxu0 0
        %969 = vmatpush2.bf16.msra.mxu0 0
        %970 = vmatprep.subr.bf16.mxu0 0
        %971 = vmatpush2.bf16.msra.mxu0 0
        %972 = vmatprep.subr.bf16.mxu0 0
        %973 = vmatpush2.bf16.msra.mxu0 0
        %974 = vmatprep.subr.bf16.mxu0 0
        %975 = vmatpush2.bf16.msra.mxu0 0
        %976 = vmatprep.mubr.bf16.mxu0 0
        %977 = vmatmul.mubr.bf16.gmra.mxu0 %v872
        %v978 = vpop.f32.mrf.mxu0
        %v979 = vadd.f32 %v894, %v978
        %v980 = vpop.f32.mrf.mxu0
        %v981 = vpop.f32.mrf.mxu0
        %v982 = vadd.f32 %v894, %v981
        %v983 = vpop.f32.mrf.mxu0
        %984 = vdwg.mxu0
        %v985 = vpack.c.bf16 %v982, %v979
        %987 = vrot.lane.b32.xlu0 %v757, 96
        %v988 = vpop.permute.xlu0 %987
        %989 = vrot.lane.b32.xlu0 %v757, 64
        %v990 = vpop.permute.xlu0 %989
        %991 = vrot.lane.b32.xlu0 %v757, 32
        %v992 = vpop.permute.xlu0 %991
        %994 = vrot.lane.b32.xlu0 %v871, 96
        %v995 = vpop.permute.xlu0 %994
        %996 = vrot.lane.b32.xlu0 %v871, 64
        %v997 = vpop.permute.xlu0 %996
        %998 = vrot.lane.b32.xlu0 %v871, 32
        %v999 = vpop.permute.xlu0 %998
        %1001 = vrot.lane.b32.xlu0 %v985, 96
        %v1002 = vpop.permute.xlu0 %1001
        %1004 = vrot.lane.b32.xlu0 %v985, 64
        %v1005 = vpop.permute.xlu0 %1004
        %1007 = vrot.lane.b32.xlu0 %v985, 32
        %v1008 = vpop.permute.xlu0 %1007
        %vm1010 = vcmask 261120
        %v1012 = vsel %vm1010, %v757, 0
        %v1015 = vsel %vm1010, %v871, 0
        %1017 = vmatprep.subr.bf16.mxu0 0
        %1018 = vmatpush1.bf16.xpose.msra.mxu0 0
        %1019 = vmatprep.subr.bf16.mxu0 0
        %1020 = vmatpush1.bf16.xpose.msra.mxu0 0
        %1021 = vmatprep.subr.bf16.mxu0 0
        %1022 = vmatpush1.bf16.xpose.msra.mxu0 0
        %1023 = vmatprep.subr.bf16.mxu0 0
        %1024 = vmatpush1.bf16.xpose.msra.mxu0 0
        %1025 = vmatprep.subr.bf16.mxu0 0
        %1026 = vmatpush1.bf16.xpose.msra.mxu0 0
        %1027 = vmatprep.subr.bf16.mxu0 0
        %1028 = vmatpush1.bf16.xpose.msra.mxu0 0
        %1029 = vmatprep.subr.bf16.mxu0 0
        %1030 = vmatpush1.bf16.xpose.msra.mxu0 0
        %1031 = vmatprep.subr.bf16.mxu0 0
        %1032 = vmatpush1.bf16.xpose.msra.mxu0 %v1015
        %1033 = vmatprep.subr.bf16.mxu0 0
        %1034 = vmatpush2.bf16.xpose.msra.mxu0 0
        %1035 = vmatprep.subr.bf16.mxu0 0
        %1036 = vmatpush2.bf16.xpose.msra.mxu0 0
        %1037 = vmatprep.subr.bf16.mxu0 0
        %1038 = vmatpush2.bf16.xpose.msra.mxu0 0
        %1039 = vmatprep.subr.bf16.mxu0 0
        %1040 = vmatpush2.bf16.xpose.msra.mxu0 0
        %1041 = vmatprep.subr.bf16.mxu0 0
        %1042 = vmatpush2.bf16.xpose.msra.mxu0 0
        %1043 = vmatprep.subr.bf16.mxu0 0
        %1044 = vmatpush2.bf16.xpose.msra.mxu0 0
        %1045 = vmatprep.subr.bf16.mxu0 0
        %1046 = vmatpush2.bf16.xpose.msra.mxu0 0
        %1047 = vmatprep.subr.bf16.mxu0 0
        %1048 = vmatpush2.bf16.xpose.msra.mxu0 0
        %1049 = vmatprep.mubr.bf16.mxu0 0
        %1050 = vmatmul.mubr.bf16.gmra.mxu0 %v1012
        %v1051 = vpop.f32.mrf.mxu0
        %v1052 = vadd.f32 0.0, %v1051
        %v1053 = vpop.f32.mrf.mxu0
        %v1054 = vpop.f32.mrf.mxu0
        %v1055 = vadd.f32 0.0, %v1054
        %v1056 = vpop.f32.mrf.mxu0
        %1057 = vdwg.mxu0
        %v1059 = vsel %vm1010, %v988, 0
        %v1062 = vsel %vm1010, %v995, 0
        %1064 = vmatprep.subr.bf16.mxu0 0
        %1065 = vmatpush1.bf16.xpose.msra.mxu0 0
        %1066 = vmatprep.subr.bf16.mxu0 0
        %1067 = vmatpush1.bf16.xpose.msra.mxu0 0
        %1068 = vmatprep.subr.bf16.mxu0 0
        %1069 = vmatpush1.bf16.xpose.msra.mxu0 0
        %1070 = vmatprep.subr.bf16.mxu0 0
        %1071 = vmatpush1.bf16.xpose.msra.mxu0 0
        %1072 = vmatprep.subr.bf16.mxu0 0
        %1073 = vmatpush1.bf16.xpose.msra.mxu0 0
        %1074 = vmatprep.subr.bf16.mxu0 0
        %1075 = vmatpush1.bf16.xpose.msra.mxu0 0
        %1076 = vmatprep.subr.bf16.mxu0 0
        %1077 = vmatpush1.bf16.xpose.msra.mxu0 0
        %1078 = vmatprep.subr.bf16.mxu0 0
        %1079 = vmatpush1.bf16.xpose.msra.mxu0 %v1062
        %1080 = vmatprep.subr.bf16.mxu0 0
        %1081 = vmatpush2.bf16.xpose.msra.mxu0 0
        %1082 = vmatprep.subr.bf16.mxu0 0
        %1083 = vmatpush2.bf16.xpose.msra.mxu0 0
        %1084 = vmatprep.subr.bf16.mxu0 0
        %1085 = vmatpush2.bf16.xpose.msra.mxu0 0
        %1086 = vmatprep.subr.bf16.mxu0 0
        %1087 = vmatpush2.bf16.xpose.msra.mxu0 0
        %1088 = vmatprep.subr.bf16.mxu0 0
        %1089 = vmatpush2.bf16.xpose.msra.mxu0 0
        %1090 = vmatprep.subr.bf16.mxu0 0
        %1091 = vmatpush2.bf16.xpose.msra.mxu0 0
        %1092 = vmatprep.subr.bf16.mxu0 0
        %1093 = vmatpush2.bf16.xpose.msra.mxu0 0
        %1094 = vmatprep.subr.bf16.mxu0 0
        %1095 = vmatpush2.bf16.xpose.msra.mxu0 0
        %1096 = vmatprep.mubr.bf16.mxu0 0
        %1097 = vmatmul.mubr.bf16.gmra.mxu0 %v1059
        %v1098 = vpop.f32.mrf.mxu0
        %v1099 = vadd.f32 0.0, %v1098
        %v1100 = vpop.f32.mrf.mxu0
        %v1101 = vpop.f32.mrf.mxu0
        %v1102 = vadd.f32 0.0, %v1101
        %v1103 = vpop.f32.mrf.mxu0
        %1104 = vdwg.mxu0
        %v1106 = vsel %vm1010, %v990, 0
        %v1109 = vsel %vm1010, %v997, 0
        %1111 = vmatprep.subr.bf16.mxu0 0
        %1112 = vmatpush1.bf16.xpose.msra.mxu0 0
        %1113 = vmatprep.subr.bf16.mxu0 0
        %1114 = vmatpush1.bf16.xpose.msra.mxu0 0
        %1115 = vmatprep.subr.bf16.mxu0 0
        %1116 = vmatpush1.bf16.xpose.msra.mxu0 0
        %1117 = vmatprep.subr.bf16.mxu0 0
        %1118 = vmatpush1.bf16.xpose.msra.mxu0 0
        %1119 = vmatprep.subr.bf16.mxu0 0
        %1120 = vmatpush1.bf16.xpose.msra.mxu0 0
        %1121 = vmatprep.subr.bf16.mxu0 0
        %1122 = vmatpush1.bf16.xpose.msra.mxu0 0
        %1123 = vmatprep.subr.bf16.mxu0 0
        %1124 = vmatpush1.bf16.xpose.msra.mxu0 0
        %1125 = vmatprep.subr.bf16.mxu0 0
        %1126 = vmatpush1.bf16.xpose.msra.mxu0 %v1109
        %1127 = vmatprep.subr.bf16.mxu0 0
        %1128 = vmatpush2.bf16.xpose.msra.mxu0 0
        %1129 = vmatprep.subr.bf16.mxu0 0
        %1130 = vmatpush2.bf16.xpose.msra.mxu0 0
        %1131 = vmatprep.subr.bf16.mxu0 0
        %1132 = vmatpush2.bf16.xpose.msra.mxu0 0
        %1133 = vmatprep.subr.bf16.mxu0 0
        %1134 = vmatpush2.bf16.xpose.msra.mxu0 0
        %1135 = vmatprep.subr.bf16.mxu0 0
        %1136 = vmatpush2.bf16.xpose.msra.mxu0 0
        %1137 = vmatprep.subr.bf16.mxu0 0
        %1138 = vmatpush2.bf16.xpose.msra.mxu0 0
        %1139 = vmatprep.subr.bf16.mxu0 0
        %1140 = vmatpush2.bf16.xpose.msra.mxu0 0
        %1141 = vmatprep.subr.bf16.mxu0 0
        %1142 = vmatpush2.bf16.xpose.msra.mxu0 0
        %1143 = vmatprep.mubr.bf16.mxu0 0
        %1144 = vmatmul.mubr.bf16.gmra.mxu0 %v1106
        %v1145 = vpop.f32.mrf.mxu0
        %v1146 = vadd.f32 0.0, %v1145
        %v1147 = vpop.f32.mrf.mxu0
        %v1148 = vpop.f32.mrf.mxu0
        %v1149 = vadd.f32 0.0, %v1148
        %v1150 = vpop.f32.mrf.mxu0
        %1151 = vdwg.mxu0
        %v1153 = vsel %vm1010, %v992, 0
        %v1156 = vsel %vm1010, %v999, 0
        %1158 = vmatprep.subr.bf16.mxu0 0
        %1159 = vmatpush1.bf16.xpose.msra.mxu0 0
        %1160 = vmatprep.subr.bf16.mxu0 0
        %1161 = vmatpush1.bf16.xpose.msra.mxu0 0
        %1162 = vmatprep.subr.bf16.mxu0 0
        %1163 = vmatpush1.bf16.xpose.msra.mxu0 0
        %1164 = vmatprep.subr.bf16.mxu0 0
        %1165 = vmatpush1.bf16.xpose.msra.mxu0 0
        %1166 = vmatprep.subr.bf16.mxu0 0
        %1167 = vmatpush1.bf16.xpose.msra.mxu0 0
        %1168 = vmatprep.subr.bf16.mxu0 0
        %1169 = vmatpush1.bf16.xpose.msra.mxu0 0
        %1170 = vmatprep.subr.bf16.mxu0 0
        %1171 = vmatpush1.bf16.xpose.msra.mxu0 0
        %1172 = vmatprep.subr.bf16.mxu0 0
        %1173 = vmatpush1.bf16.xpose.msra.mxu0 %v1156
        %1174 = vmatprep.subr.bf16.mxu0 0
        %1175 = vmatpush2.bf16.xpose.msra.mxu0 0
        %1176 = vmatprep.subr.bf16.mxu0 0
        %1177 = vmatpush2.bf16.xpose.msra.mxu0 0
        %1178 = vmatprep.subr.bf16.mxu0 0
        %1179 = vmatpush2.bf16.xpose.msra.mxu0 0
        %1180 = vmatprep.subr.bf16.mxu0 0
        %1181 = vmatpush2.bf16.xpose.msra.mxu0 0
        %1182 = vmatprep.subr.bf16.mxu0 0
        %1183 = vmatpush2.bf16.xpose.msra.mxu0 0
        %1184 = vmatprep.subr.bf16.mxu0 0
        %1185 = vmatpush2.bf16.xpose.msra.mxu0 0
        %1186 = vmatprep.subr.bf16.mxu0 0
        %1187 = vmatpush2.bf16.xpose.msra.mxu0 0
        %1188 = vmatprep.subr.bf16.mxu0 0
        %1189 = vmatpush2.bf16.xpose.msra.mxu0 0
        %1190 = vmatprep.mubr.bf16.mxu0 0
        %1191 = vmatmul.mubr.bf16.gmra.mxu0 %v1153
        %v1192 = vpop.f32.mrf.mxu0
        %v1193 = vadd.f32 0.0, %v1192
        %v1194 = vpop.f32.mrf.mxu0
        %v1195 = vpop.f32.mrf.mxu0
        %v1196 = vadd.f32 0.0, %v1195
        %v1197 = vpop.f32.mrf.mxu0
        %1198 = vdwg.mxu0
        %v1199 = vmul.f32 %v1052, 0.17677669
        %v1200 = vmul.f32 %v1055, 0.17677669
        %v1201 = vmul.f32 %v1099, 0.17677669
        %v1202 = vmul.f32 %v1102, 0.17677669
        %v1203 = vmul.f32 %v1146, 0.17677669
        %v1204 = vmul.f32 %v1149, 0.17677669
        %v1205 = vmul.f32 %v1193, 0.17677669
        %v1206 = vmul.f32 %v1196, 0.17677669
        %v1207 = vld [vmem:[#allocation8] sm:$0xff]
        %v1208 = vld [vmem:[#allocation8 + $0x8] sm:$0xff]
        %v1209 = vadd.f32 %v1199, %v1207
        %v1210 = vadd.f32 %v1200, %v1208
        %v1211 = vadd.f32 %v1201, %v1207
        %v1212 = vadd.f32 %v1202, %v1208
        %v1213 = vadd.f32 %v1203, %v1207
        %v1214 = vadd.f32 %v1204, %v1208
        %v1215 = vadd.f32 %v1205, %v1207
        %v1216 = vadd.f32 %v1206, %v1208
        %vm1217 = vcmask 130048
        %v1218 = vsel %vm1217, %v1209, -inf
        %1219 = vmax.xlane.f32.xlu0 %v1218
        %v1220 = vpop.xlane.xlu0 %1219
        %v1221 = vsel %vm1217, %v1210, -inf
        %1222 = vmax.xlane.f32.xlu0 %v1221
        %v1223 = vpop.xlane.xlu0 %1222
        %v1224 = vsel %vm1217, %v1211, -inf
        %1225 = vmax.xlane.f32.xlu0 %v1224
        %v1226 = vpop.xlane.xlu0 %1225
        %v1227 = vsel %vm1217, %v1212, -inf
        %1228 = vmax.xlane.f32.xlu0 %v1227
        %v1229 = vpop.xlane.xlu0 %1228
        %v1230 = vsel %vm1217, %v1213, -inf
        %1231 = vmax.xlane.f32.xlu0 %v1230
        %v1232 = vpop.xlane.xlu0 %1231
        %v1233 = vsel %vm1217, %v1214, -inf
        %1234 = vmax.xlane.f32.xlu0 %v1233
        %v1235 = vpop.xlane.xlu0 %1234
        %v1236 = vsel %vm1217, %v1215, -inf
        %1237 = vmax.xlane.f32.xlu0 %v1236
        %v1238 = vpop.xlane.xlu0 %1237
        %v1239 = vsel %vm1217, %v1216, -inf
        %1240 = vmax.xlane.f32.xlu0 %v1239
        %v1241 = vpop.xlane.xlu0 %1240
        %v1242 = vsub.f32 %v1209, %v1220
        %v1243 = vsub.f32 %v1210, %v1223
        %v1244 = vsub.f32 %v1211, %v1226
        %v1245 = vsub.f32 %v1212, %v1229
        %v1246 = vsub.f32 %v1213, %v1232
        %v1247 = vsub.f32 %v1214, %v1235
        %v1248 = vsub.f32 %v1215, %v1238
        %v1249 = vsub.f32 %v1216, %v1241
        %v1250 = vmul.f32 %v1242, 1.442695
        %v1251 = vpow.pop %v1250
        %v1252 = vmul.f32 %v1243, 1.442695
        %v1253 = vpow.pop %v1252
        %v1254 = vmul.f32 %v1244, 1.442695
        %v1255 = vpow.pop %v1254
        %v1256 = vmul.f32 %v1245, 1.442695
        %v1257 = vpow.pop %v1256
        %v1258 = vmul.f32 %v1246, 1.442695
        %v1259 = vpow.pop %v1258
        %v1260 = vmul.f32 %v1247, 1.442695
        %v1261 = vpow.pop %v1260
        %v1262 = vmul.f32 %v1248, 1.442695
        %v1263 = vpow.pop %v1262
        %v1264 = vmul.f32 %v1249, 1.442695
        %v1265 = vpow.pop %v1264
        %v1266 = vsel %vm1217, %v1251, 0.0
        %1267 = vadd.xlane.f32.xlu0 %v1266
        %v1268 = vpop.xlane.xlu0 %1267
        %v1269 = vsel %vm1217, %v1253, 0.0
        %1270 = vadd.xlane.f32.xlu0 %v1269
        %v1271 = vpop.xlane.xlu0 %1270
        %v1272 = vsel %vm1217, %v1255, 0.0
        %1273 = vadd.xlane.f32.xlu0 %v1272
        %v1274 = vpop.xlane.xlu0 %1273
        %v1275 = vsel %vm1217, %v1257, 0.0
        %1276 = vadd.xlane.f32.xlu0 %v1275
        %v1277 = vpop.xlane.xlu0 %1276
        %v1278 = vsel %vm1217, %v1259, 0.0
        %1279 = vadd.xlane.f32.xlu0 %v1278
        %v1280 = vpop.xlane.xlu0 %1279
        %v1281 = vsel %vm1217, %v1261, 0.0
        %1282 = vadd.xlane.f32.xlu0 %v1281
        %v1283 = vpop.xlane.xlu0 %1282
        %v1284 = vsel %vm1217, %v1263, 0.0
        %1285 = vadd.xlane.f32.xlu0 %v1284
        %v1286 = vpop.xlane.xlu0 %1285
        %v1287 = vsel %vm1217, %v1265, 0.0
        %1288 = vadd.xlane.f32.xlu0 %v1287
        %v1289 = vpop.xlane.xlu0 %1288
        %v1290 = vrcp.pop %v1268
        %v1291 = vmul.f32 %v1251, %v1290
        %v1292 = vrcp.pop %v1271
        %v1293 = vmul.f32 %v1253, %v1292
        %v1294 = vrcp.pop %v1274
        %v1295 = vmul.f32 %v1255, %v1294
        %v1296 = vrcp.pop %v1277
        %v1297 = vmul.f32 %v1257, %v1296
        %v1298 = vrcp.pop %v1280
        %v1299 = vmul.f32 %v1259, %v1298
        %v1300 = vrcp.pop %v1283
        %v1301 = vmul.f32 %v1261, %v1300
        %v1302 = vrcp.pop %v1286
        %v1303 = vmul.f32 %v1263, %v1302
        %v1304 = vrcp.pop %v1289
        %v1305 = vmul.f32 %v1265, %v1304
        %s1306 = sadd.s32 %s643, 9153
        %v1307 = vlaneseq
        %v1308 = vand.u32 %v1307, 127
        %v1309 = vlaneseq
        %v1310 = vshrl.u32 %v1309, 7
        %v1311 = vadd.s32 %v1310, 8
        %v1312 = vmul.u32 %v1310, 16
        %v1313 = vmul.u32 %v1311, 16
        %v1314 = vadd.s32 %v1308, %v1312
        %v1315 = vadd.s32 %v1308, %v1313
        %v1316 = vadd.s32 %v1314, 256
        %v1317 = vadd.s32 %v1315, 256
        %v1318 = vadd.s32 %v1314, 512
        %v1319 = vadd.s32 %v1315, 512
        %v1320 = vadd.s32 %v1314, 768
        %v1321 = vadd.s32 %v1315, 768
        %v1322 = vstv %s1306
        %v1323 = vadd.s32 %v1314, %v1322
        %v1324 = vadd.s32 %v1315, %v1322
        %v1325 = vadd.s32 %v1316, %v1322
        %v1326 = vadd.s32 %v1317, %v1322
        %v1327 = vadd.s32 %v1318, %v1322
        %v1328 = vadd.s32 %v1319, %v1322
        %v1329 = vadd.s32 %v1320, %v1322
        %v1330 = vadd.s32 %v1321, %v1322
        %v1331 = vmul.u32 %v1323, 2654435761
        %v1332 = vmul.u32 %v1324, 2654435761
        %v1333 = vmul.u32 %v1325, 2654435761
        %v1334 = vmul.u32 %v1326, 2654435761
        %v1335 = vmul.u32 %v1327, 2654435761
        %v1336 = vmul.u32 %v1328, 2654435761
        %v1337 = vmul.u32 %v1329, 2654435761
        %v1338 = vmul.u32 %v1330, 2654435761
        %v1339 = vshrl.u32 %v1331, 16
        %v1340 = vshrl.u32 %v1332, 16
        %v1341 = vshrl.u32 %v1333, 16
        %v1342 = vshrl.u32 %v1334, 16
        %v1343 = vshrl.u32 %v1335, 16
        %v1344 = vshrl.u32 %v1336, 16
        %v1345 = vshrl.u32 %v1337, 16
        %v1346 = vshrl.u32 %v1338, 16
        %v1347 = vxor.u32 %v1331, %v1339
        %v1348 = vxor.u32 %v1332, %v1340
        %v1349 = vxor.u32 %v1333, %v1341
        %v1350 = vxor.u32 %v1334, %v1342
        %v1351 = vxor.u32 %v1335, %v1343
        %v1352 = vxor.u32 %v1336, %v1344
        %v1353 = vxor.u32 %v1337, %v1345
        %v1354 = vxor.u32 %v1338, %v1346
        %v1355 = vmul.u32 %v1347, 2146121005
        %v1356 = vmul.u32 %v1348, 2146121005
        %v1357 = vmul.u32 %v1349, 2146121005
        %v1358 = vmul.u32 %v1350, 2146121005
        %v1359 = vmul.u32 %v1351, 2146121005
        %v1360 = vmul.u32 %v1352, 2146121005
        %v1361 = vmul.u32 %v1353, 2146121005
        %v1362 = vmul.u32 %v1354, 2146121005
        %v1363 = vshrl.u32 %v1355, 15
        %v1364 = vshrl.u32 %v1356, 15
        %v1365 = vshrl.u32 %v1357, 15
        %v1366 = vshrl.u32 %v1358, 15
        %v1367 = vshrl.u32 %v1359, 15
        %v1368 = vshrl.u32 %v1360, 15
        %v1369 = vshrl.u32 %v1361, 15
        %v1370 = vshrl.u32 %v1362, 15
        %v1371 = vxor.u32 %v1355, %v1363
        %v1372 = vxor.u32 %v1356, %v1364
        %v1373 = vxor.u32 %v1357, %v1365
        %v1374 = vxor.u32 %v1358, %v1366
        %v1375 = vxor.u32 %v1359, %v1367
        %v1376 = vxor.u32 %v1360, %v1368
        %v1377 = vxor.u32 %v1361, %v1369
        %v1378 = vxor.u32 %v1362, %v1370
        %v1379 = vmul.u32 %v1371, 2221713035
        %v1380 = vmul.u32 %v1372, 2221713035
        %v1381 = vmul.u32 %v1373, 2221713035
        %v1382 = vmul.u32 %v1374, 2221713035
        %v1383 = vmul.u32 %v1375, 2221713035
        %v1384 = vmul.u32 %v1376, 2221713035
        %v1385 = vmul.u32 %v1377, 2221713035
        %v1386 = vmul.u32 %v1378, 2221713035
        %v1387 = vshrl.u32 %v1379, 16
        %v1388 = vshrl.u32 %v1380, 16
        %v1389 = vshrl.u32 %v1381, 16
        %v1390 = vshrl.u32 %v1382, 16
        %v1391 = vshrl.u32 %v1383, 16
        %v1392 = vshrl.u32 %v1384, 16
        %v1393 = vshrl.u32 %v1385, 16
        %v1394 = vshrl.u32 %v1386, 16
        %v1395 = vxor.u32 %v1379, %v1387
        %v1396 = vxor.u32 %v1380, %v1388
        %v1397 = vxor.u32 %v1381, %v1389
        %v1398 = vxor.u32 %v1382, %v1390
        %v1399 = vxor.u32 %v1383, %v1391
        %v1400 = vxor.u32 %v1384, %v1392
        %v1401 = vxor.u32 %v1385, %v1393
        %v1402 = vxor.u32 %v1386, %v1394
        %vm1403 = vcmp.lt.u32.totalorder %v1395, 3865470566
        %vm1404 = vcmp.lt.u32.totalorder %v1396, 3865470566
        %vm1405 = vcmp.lt.u32.totalorder %v1397, 3865470566
        %vm1406 = vcmp.lt.u32.totalorder %v1398, 3865470566
        %vm1407 = vcmp.lt.u32.totalorder %v1399, 3865470566
        %vm1408 = vcmp.lt.u32.totalorder %v1400, 3865470566
        %vm1409 = vcmp.lt.u32.totalorder %v1401, 3865470566
        %vm1410 = vcmp.lt.u32.totalorder %v1402, 3865470566
        %v1411 = vmul.f32 %v1291, 1.1111112
        %v1412 = vmul.f32 %v1293, 1.1111112
        %v1413 = vmul.f32 %v1295, 1.1111112
        %v1414 = vmul.f32 %v1297, 1.1111112
        %v1415 = vmul.f32 %v1299, 1.1111112
        %v1416 = vmul.f32 %v1301, 1.1111112
        %v1417 = vmul.f32 %v1303, 1.1111112
        %v1418 = vmul.f32 %v1305, 1.1111112
        %v1419 = vsel %vm1403, %v1411, 0.0
        %v1420 = vsel %vm1404, %v1412, 0.0
        %v1421 = vsel %vm1405, %v1413, 0.0
        %v1422 = vsel %vm1406, %v1414, 0.0
        %v1423 = vsel %vm1407, %v1415, 0.0
        %v1424 = vsel %vm1408, %v1416, 0.0
        %v1425 = vsel %vm1409, %v1417, 0.0
        %v1426 = vsel %vm1410, %v1418, 0.0
        %v1427 = vpack.c.bf16 %v1420, %v1419
        %v1428 = vpack.c.bf16 %v1422, %v1421
        %v1429 = vpack.c.bf16 %v1424, %v1423
        %v1430 = vpack.c.bf16 %v1426, %v1425
        %v1432 = vsel %vm1217, %v1427, 0
        %1434 = vmatprep.subr.bf16.mxu0 0
        %1435 = vmatpush1.bf16.msra.mxu0 0
        %1436 = vmatprep.subr.bf16.mxu0 0
        %1437 = vmatpush1.bf16.msra.mxu0 0
        %1438 = vmatprep.subr.bf16.mxu0 0
        %1439 = vmatpush1.bf16.msra.mxu0 0
        %1440 = vmatprep.subr.bf16.mxu0 0
        %1441 = vmatpush1.bf16.msra.mxu0 0
        %1442 = vmatprep.subr.bf16.mxu0 0
        %1443 = vmatpush1.bf16.msra.mxu0 0
        %1444 = vmatprep.subr.bf16.mxu0 0
        %1445 = vmatpush1.bf16.msra.mxu0 0
        %1446 = vmatprep.subr.bf16.mxu0 0
        %1447 = vmatpush1.bf16.msra.mxu0 0
        %1448 = vmatprep.subr.bf16.mxu0 0
        %1449 = vmatpush1.bf16.msra.mxu0 %v985
        %1450 = vmatprep.subr.bf16.mxu0 0
        %1451 = vmatpush2.bf16.msra.mxu0 0
        %1452 = vmatprep.subr.bf16.mxu0 0
        %1453 = vmatpush2.bf16.msra.mxu0 0
        %1454 = vmatprep.subr.bf16.mxu0 0
        %1455 = vmatpush2.bf16.msra.mxu0 0
        %1456 = vmatprep.subr.bf16.mxu0 0
        %1457 = vmatpush2.bf16.msra.mxu0 0
        %1458 = vmatprep.subr.bf16.mxu0 0
        %1459 = vmatpush2.bf16.msra.mxu0 0
        %1460 = vmatprep.subr.bf16.mxu0 0
        %1461 = vmatpush2.bf16.msra.mxu0 0
        %1462 = vmatprep.subr.bf16.mxu0 0
        %1463 = vmatpush2.bf16.msra.mxu0 0
        %1464 = vmatprep.subr.bf16.mxu0 0
        %1465 = vmatpush2.bf16.msra.mxu0 0
        %1466 = vmatprep.mubr.bf16.mxu0 0
        %1467 = vmatmul.mubr.bf16.gmra.mxu0 %v1432
        %v1468 = vpop.f32.mrf.mxu0
        %v1469 = vadd.f32 0.0, %v1468
        %v1470 = vpop.f32.mrf.mxu0
        %v1471 = vpop.f32.mrf.mxu0
        %v1472 = vadd.f32 0.0, %v1471
        %v1473 = vpop.f32.mrf.mxu0
        %1474 = vdwg.mxu0
        %v1476 = vsel %vm1217, %v1428, 0
        %1478 = vmatprep.subr.bf16.mxu0 0
        %1479 = vmatpush1.bf16.msra.mxu0 0
        %1480 = vmatprep.subr.bf16.mxu0 0
        %1481 = vmatpush1.bf16.msra.mxu0 0
        %1482 = vmatprep.subr.bf16.mxu0 0
        %1483 = vmatpush1.bf16.msra.mxu0 0
        %1484 = vmatprep.subr.bf16.mxu0 0
        %1485 = vmatpush1.bf16.msra.mxu0 0
        %1486 = vmatprep.subr.bf16.mxu0 0
        %1487 = vmatpush1.bf16.msra.mxu0 0
        %1488 = vmatprep.subr.bf16.mxu0 0
        %1489 = vmatpush1.bf16.msra.mxu0 0
        %1490 = vmatprep.subr.bf16.mxu0 0
        %1491 = vmatpush1.bf16.msra.mxu0 0
        %1492 = vmatprep.subr.bf16.mxu0 0
        %1493 = vmatpush1.bf16.msra.mxu0 %v1002
        %1494 = vmatprep.subr.bf16.mxu0 0
        %1495 = vmatpush2.bf16.msra.mxu0 0
        %1496 = vmatprep.subr.bf16.mxu0 0
        %1497 = vmatpush2.bf16.msra.mxu0 0
        %1498 = vmatprep.subr.bf16.mxu0 0
        %1499 = vmatpush2.bf16.msra.mxu0 0
        %1500 = vmatprep.subr.bf16.mxu0 0
        %1501 = vmatpush2.bf16.msra.mxu0 0
        %1502 = vmatprep.subr.bf16.mxu0 0
        %1503 = vmatpush2.bf16.msra.mxu0 0
        %1504 = vmatprep.subr.bf16.mxu0 0
        %1505 = vmatpush2.bf16.msra.mxu0 0
        %1506 = vmatprep.subr.bf16.mxu0 0
        %1507 = vmatpush2.bf16.msra.mxu0 0
        %1508 = vmatprep.subr.bf16.mxu0 0
        %1509 = vmatpush2.bf16.msra.mxu0 0
        %1510 = vmatprep.mubr.bf16.mxu0 0
        %1511 = vmatmul.mubr.bf16.gmra.mxu0 %v1476
        %v1512 = vpop.f32.mrf.mxu0
        %v1513 = vadd.f32 0.0, %v1512
        %v1514 = vpop.f32.mrf.mxu0
        %v1515 = vpop.f32.mrf.mxu0
        %v1516 = vadd.f32 0.0, %v1515
        %v1517 = vpop.f32.mrf.mxu0
        %1518 = vdwg.mxu0
        %v1520 = vsel %vm1217, %v1429, 0
        %1522 = vmatprep.subr.bf16.mxu0 0
        %1523 = vmatpush1.bf16.msra.mxu0 0
        %1524 = vmatprep.subr.bf16.mxu0 0
        %1525 = vmatpush1.bf16.msra.mxu0 0
        %1526 = vmatprep.subr.bf16.mxu0 0
        %1527 = vmatpush1.bf16.msra.mxu0 0
        %1528 = vmatprep.subr.bf16.mxu0 0
        %1529 = vmatpush1.bf16.msra.mxu0 0
        %1530 = vmatprep.subr.bf16.mxu0 0
        %1531 = vmatpush1.bf16.msra.mxu0 0
        %1532 = vmatprep.subr.bf16.mxu0 0
        %1533 = vmatpush1.bf16.msra.mxu0 0
        %1534 = vmatprep.subr.bf16.mxu0 0
        %1535 = vmatpush1.bf16.msra.mxu0 0
        %1536 = vmatprep.subr.bf16.mxu0 0
        %1537 = vmatpush1.bf16.msra.mxu0 %v1005
        %1538 = vmatprep.subr.bf16.mxu0 0
        %1539 = vmatpush2.bf16.msra.mxu0 0
        %1540 = vmatprep.subr.bf16.mxu0 0
        %1541 = vmatpush2.bf16.msra.mxu0 0
        %1542 = vmatprep.subr.bf16.mxu0 0
        %1543 = vmatpush2.bf16.msra.mxu0 0
        %1544 = vmatprep.subr.bf16.mxu0 0
        %1545 = vmatpush2.bf16.msra.mxu0 0
        %1546 = vmatprep.subr.bf16.mxu0 0
        %1547 = vmatpush2.bf16.msra.mxu0 0
        %1548 = vmatprep.subr.bf16.mxu0 0
        %1549 = vmatpush2.bf16.msra.mxu0 0
        %1550 = vmatprep.subr.bf16.mxu0 0
        %1551 = vmatpush2.bf16.msra.mxu0 0
        %1552 = vmatprep.subr.bf16.mxu0 0
        %1553 = vmatpush2.bf16.msra.mxu0 0
        %1554 = vmatprep.mubr.bf16.mxu0 0
        %1555 = vmatmul.mubr.bf16.gmra.mxu0 %v1520
        %v1556 = vpop.f32.mrf.mxu0
        %v1557 = vadd.f32 0.0, %v1556
        %v1558 = vpop.f32.mrf.mxu0
        %v1559 = vpop.f32.mrf.mxu0
        %v1560 = vadd.f32 0.0, %v1559
        %v1561 = vpop.f32.mrf.mxu0
        %1562 = vdwg.mxu0
        %v1564 = vsel %vm1217, %v1430, 0
        %1566 = vmatprep.subr.bf16.mxu0 0
        %1567 = vmatpush1.bf16.msra.mxu0 0
        %1568 = vmatprep.subr.bf16.mxu0 0
        %1569 = vmatpush1.bf16.msra.mxu0 0
        %1570 = vmatprep.subr.bf16.mxu0 0
        %1571 = vmatpush1.bf16.msra.mxu0 0
        %1572 = vmatprep.subr.bf16.mxu0 0
        %1573 = vmatpush1.bf16.msra.mxu0 0
        %1574 = vmatprep.subr.bf16.mxu0 0
        %1575 = vmatpush1.bf16.msra.mxu0 0
        %1576 = vmatprep.subr.bf16.mxu0 0
        %1577 = vmatpush1.bf16.msra.mxu0 0
        %1578 = vmatprep.subr.bf16.mxu0 0
        %1579 = vmatpush1.bf16.msra.mxu0 0
        %1580 = vmatprep.subr.bf16.mxu0 0
        %1581 = vmatpush1.bf16.msra.mxu0 %v1008
        %1582 = vmatprep.subr.bf16.mxu0 0
        %1583 = vmatpush2.bf16.msra.mxu0 0
        %1584 = vmatprep.subr.bf16.mxu0 0
        %1585 = vmatpush2.bf16.msra.mxu0 0
        %1586 = vmatprep.subr.bf16.mxu0 0
        %1587 = vmatpush2.bf16.msra.mxu0 0
        %1588 = vmatprep.subr.bf16.mxu0 0
        %1589 = vmatpush2.bf16.msra.mxu0 0
        %1590 = vmatprep.subr.bf16.mxu0 0
        %1591 = vmatpush2.bf16.msra.mxu0 0
        %1592 = vmatprep.subr.bf16.mxu0 0
        %1593 = vmatpush2.bf16.msra.mxu0 0
        %1594 = vmatprep.subr.bf16.mxu0 0
        %1595 = vmatpush2.bf16.msra.mxu0 0
        %1596 = vmatprep.subr.bf16.mxu0 0
        %1597 = vmatpush2.bf16.msra.mxu0 0
        %1598 = vmatprep.mubr.bf16.mxu0 0
        %1599 = vmatmul.mubr.bf16.gmra.mxu0 %v1564
        %v1600 = vpop.f32.mrf.mxu0
        %v1601 = vadd.f32 0.0, %v1600
        %v1602 = vpop.f32.mrf.mxu0
        %v1603 = vpop.f32.mrf.mxu0
        %v1604 = vadd.f32 0.0, %v1603
        %v1605 = vpop.f32.mrf.mxu0
        %1606 = vdwg.mxu0
        %1609 = vrot.lane.b32.xlu0 %v1513, 32
        %v1610 = vpop.permute.xlu0 %1609
        %1611 = vrot.lane.b32.xlu0 %v1516, 32
        %v1612 = vpop.permute.xlu0 %1611
        %1617 = vrot.lane.b32.xlu0 %v1557, 64
        %v1618 = vpop.permute.xlu0 %1617
        %1619 = vrot.lane.b32.xlu0 %v1560, 64
        %v1620 = vpop.permute.xlu0 %1619
        %1625 = vrot.lane.b32.xlu0 %v1601, 96
        %v1626 = vpop.permute.xlu0 %1625
        %1627 = vrot.lane.b32.xlu0 %v1604, 96
        %v1628 = vpop.permute.xlu0 %1627
        %v1631 = vsel %vm1010, %v1469, %v1610
        %v1632 = vsel %vm1010, %v1472, %v1612
        %vm1633 = vcmask 523264
        %v1634 = vsel %vm1633, %v1631, %v1618
        %v1635 = vsel %vm1633, %v1632, %v1620
        %vm1636 = vcmask 785408
        %v1637 = vsel %vm1636, %v1634, %v1626
        %v1638 = vsel %vm1636, %v1635, %v1628
        %v1639 = vpack.c.bf16 %v1638, %v1637
        %v1640 = vld [vmem:[#allocation14] sm:$0xf]
        %v1641 = vld [vmem:[#allocation14 + $0x4] sm:$0xf]
        %v1642 = vld [vmem:[#allocation14 + $0x8] sm:$0xf]
        %v1643 = vld [vmem:[#allocation14 + $0xc] sm:$0xf]
        %v1644 = vld [vmem:[#allocation14 + $0x10] sm:$0xf]
        %v1645 = vld [vmem:[#allocation14 + $0x14] sm:$0xf]
        %v1646 = vld [vmem:[#allocation14 + $0x18] sm:$0xf]
        %v1647 = vld [vmem:[#allocation14 + $0x1c] sm:$0xf]
        %v1648 = vld [vmem:[#allocation14 + $0x20] sm:$0xf]
        %v1649 = vld [vmem:[#allocation14 + $0x24] sm:$0xf]
        %v1650 = vld [vmem:[#allocation14 + $0x28] sm:$0xf]
        %v1651 = vld [vmem:[#allocation14 + $0x2c] sm:$0xf]
        %v1652 = vld [vmem:[#allocation14 + $0x30] sm:$0xf]
        %v1653 = vld [vmem:[#allocation14 + $0x34] sm:$0xf]
        %v1654 = vld [vmem:[#allocation14 + $0x38] sm:$0xf]
        %v1655 = vld [vmem:[#allocation14 + $0x3c] sm:$0xf]
        %v1656 = vld [vmem:[%s11] sm:$0x1]
        %v1658 = vlaneseq
        %v1659 = vshrl.u32 %v1658, 7
        %v1660 = vsub.s32 0, %v1659
        %v1661 = vrot.slane %v1656, %v1660
        %v1679 = vunpack.c.l.b16 %v1640
        %v1680 = vunpack.c.l.b16 %v1641
        %v1681 = vunpack.c.l.b16 %v1642
        %v1682 = vunpack.c.l.b16 %v1643
        %v1683 = vunpack.c.l.b16 %v1644
        %v1684 = vunpack.c.l.b16 %v1645
        %v1685 = vunpack.c.l.b16 %v1646
        %v1686 = vunpack.c.l.b16 %v1647
        %v1687 = vunpack.c.l.b16 %v1648
        %v1688 = vunpack.c.l.b16 %v1649
        %v1689 = vunpack.c.l.b16 %v1650
        %v1690 = vunpack.c.l.b16 %v1651
        %v1691 = vunpack.c.l.b16 %v1652
        %v1692 = vunpack.c.l.b16 %v1653
        %v1693 = vunpack.c.l.b16 %v1654
        %v1694 = vunpack.c.l.b16 %v1655
        %v1695 = vpack.c.b16 %v1680, %v1679
        %v1696 = vpack.c.b16 %v1682, %v1681
        %v1697 = vpack.c.b16 %v1684, %v1683
        %v1698 = vpack.c.b16 %v1686, %v1685
        %v1699 = vpack.c.b16 %v1688, %v1687
        %v1700 = vpack.c.b16 %v1690, %v1689
        %v1701 = vpack.c.b16 %v1692, %v1691
        %v1702 = vpack.c.b16 %v1694, %v1693
        %1711 = vmatprep.subr.bf16.mxu0 0
        %1712 = vmatpush1.bf16.msra.mxu0 %v1702
        %1713 = vmatprep.subr.bf16.mxu0 0
        %1714 = vmatpush1.bf16.msra.mxu0 %v1701
        %1715 = vmatprep.subr.bf16.mxu0 0
        %1716 = vmatpush1.bf16.msra.mxu0 %v1700
        %1717 = vmatprep.subr.bf16.mxu0 0
        %1718 = vmatpush1.bf16.msra.mxu0 %v1699
        %1719 = vmatprep.subr.bf16.mxu0 0
        %1720 = vmatpush1.bf16.msra.mxu0 %v1698
        %1721 = vmatprep.subr.bf16.mxu0 0
        %1722 = vmatpush1.bf16.msra.mxu0 %v1697
        %1723 = vmatprep.subr.bf16.mxu0 0
        %1724 = vmatpush1.bf16.msra.mxu0 %v1696
        %1725 = vmatprep.subr.bf16.mxu0 0
        %1726 = vmatpush1.bf16.msra.mxu0 %v1695
        %1727 = vmatprep.subr.bf16.mxu0 0
        %1728 = vmatpush2.bf16.msra.mxu0 0
        %1729 = vmatprep.subr.bf16.mxu0 0
        %1730 = vmatpush2.bf16.msra.mxu0 0
        %1731 = vmatprep.subr.bf16.mxu0 0
        %1732 = vmatpush2.bf16.msra.mxu0 0
        %1733 = vmatprep.subr.bf16.mxu0 0
        %1734 = vmatpush2.bf16.msra.mxu0 0
        %1735 = vmatprep.subr.bf16.mxu0 0
        %1736 = vmatpush2.bf16.msra.mxu0 0
        %1737 = vmatprep.subr.bf16.mxu0 0
        %1738 = vmatpush2.bf16.msra.mxu0 0
        %1739 = vmatprep.subr.bf16.mxu0 0
        %1740 = vmatpush2.bf16.msra.mxu0 0
        %1741 = vmatprep.subr.bf16.mxu0 0
        %1742 = vmatpush2.bf16.msra.mxu0 0
        %1743 = vmatprep.mubr.bf16.mxu0 0
        %1744 = vmatmul.mubr.bf16.gmra.mxu0 %v1639
        %v1745 = vpop.f32.mrf.mxu0
        %v1746 = vadd.f32 %v1661, %v1745
        %v1747 = vpop.f32.mrf.mxu0
        %v1748 = vpop.f32.mrf.mxu0
        %v1749 = vadd.f32 %v1661, %v1748
        %v1750 = vpop.f32.mrf.mxu0
        %1751 = vdwg.mxu0
        %s1752 = sadd.s32 %s643, 17072
        %v1753 = vmul.u32 %v1310, 128
        %v1754 = vmul.u32 %v1311, 128
        %v1755 = vadd.s32 %v1308, %v1753
        %v1756 = vadd.s32 %v1308, %v1754
        %v1757 = vstv %s1752
        %v1758 = vadd.s32 %v1755, %v1757
        %v1759 = vadd.s32 %v1756, %v1757
        %v1760 = vmul.u32 %v1758, 2654435761
        %v1761 = vmul.u32 %v1759, 2654435761
        %v1762 = vshrl.u32 %v1760, 16
        %v1763 = vshrl.u32 %v1761, 16
        %v1764 = vxor.u32 %v1760, %v1762
        %v1765 = vxor.u32 %v1761, %v1763
        %v1766 = vmul.u32 %v1764, 2146121005
        %v1767 = vmul.u32 %v1765, 2146121005
        %v1768 = vshrl.u32 %v1766, 15
        %v1769 = vshrl.u32 %v1767, 15
        %v1770 = vxor.u32 %v1766, %v1768
        %v1771 = vxor.u32 %v1767, %v1769
        %v1772 = vmul.u32 %v1770, 2221713035
        %v1773 = vmul.u32 %v1771, 2221713035
        %v1774 = vshrl.u32 %v1772, 16
        %v1775 = vshrl.u32 %v1773, 16
        %v1776 = vxor.u32 %v1772, %v1774
        %v1777 = vxor.u32 %v1773, %v1775
        %vm1778 = vcmp.lt.u32.totalorder %v1776, 3865470566
        %vm1779 = vcmp.lt.u32.totalorder %v1777, 3865470566
        %v1780 = vmul.f32 %v1746, 1.1111112
        %v1781 = vmul.f32 %v1749, 1.1111112
        %v1782 = vsel %vm1778, %v1780, 0.0
        %v1783 = vsel %vm1779, %v1781, 0.0
        %v1784 = vadd.f32 %v1782, %v637
        %v1785 = vadd.f32 %v1783, %v638
        %1786 = vadd.xlane.f32.xlu0 %v1784
        %v1787 = vpop.xlane.xlu0 %1786
        %1788 = vadd.xlane.f32.xlu0 %v1785
        %v1789 = vpop.xlane.xlu0 %1788
        %v1790 = vrcp.pop 128.0
        %v1791 = vmul.f32 %v1787, %v1790
        %v1792 = vmul.f32 %v1789, %v1790
        %v1793 = vsub.f32 %v1784, %v1791
        %v1794 = vsub.f32 %v1785, %v1792
        %v1795 = vmul.f32 %v1793, %v1793
        %v1796 = vmul.f32 %v1794, %v1794
        %1797 = vadd.xlane.f32.xlu0 %v1795
        %v1798 = vpop.xlane.xlu0 %1797
        %1799 = vadd.xlane.f32.xlu0 %v1796
        %v1800 = vpop.xlane.xlu0 %1799
        %v1801 = vmul.f32 %v1798, %v1790
        %v1802 = vmul.f32 %v1800, %v1790
        %v1803 = vadd.f32 %v1801, 1e-05
        %v1804 = vadd.f32 %v1802, 1e-05
        %v1805 = vrsqrt.pop %v1803
        %v1806 = vrsqrt.pop %v1804
        %v1807 = vmul.f32 %v1793, %v1805
        %v1808 = vmul.f32 %v1794, %v1806
        %v1809 = vld [vmem:[%s12] sm:$0x1]
        %v1811 = vlaneseq
        %v1812 = vshrl.u32 %v1811, 7
        %v1813 = vsub.s32 0, %v1812
        %v1814 = vrot.slane %v1809, %v1813
        %v1816 = vmul.f32 %v1807, %v1814
        %v1817 = vmul.f32 %v1808, %v1814
        %v1818 = vld [vmem:[%s13] sm:$0x1]
        %v1820 = vlaneseq
        %v1821 = vshrl.u32 %v1820, 7
        %v1822 = vsub.s32 0, %v1821
        %v1823 = vrot.slane %v1818, %v1822
        %v1825 = vadd.f32 %v1816, %v1823
        %v1826 = vadd.f32 %v1817, %v1823
        %1827 = vst [vmem:[%s635] sm:$0xff] %v1825
        %1828 = vst [vmem:[%s635 + $0x8] sm:$0xff] %v1826
        %s1829 = sand.u32 %s354, 1
        %s1830 = scalar_lea.sflag [#allocation4], %s1829
        %s1831 = sand.u32 %s354, 1
        %s1832 = smul.addr %s1831, 16
        %s1833 = scalar_lea.vmem [#allocation16], %s1832
        // Predicated region
        $region109: #{tpu_custom_call.1} parent=75 // pred_check
          %p1834 = pneg %p364
        $region110: #{tpu_custom_call.1} parent=75 // pred_check_branch
          %1836 = sbr.rel (%p1834) target = $region112
        $region111: #{tpu_custom_call.1} parent=75 // pred_region
          %s1838 = ssub.s32 256, 256
          %1839 = vsyncadd %s1830, %s1838
          %s1840 = smul.addr %s37, 2
          %s1841 = smul.addr %s1840, 128
          %s1842 = scalar_lea.hbm %s14, %s1841
          %s1843 = sshll.u32 %s1833, 4
          %s1844 = int_to_ptr.vmem [resolvable:$true] %s1843
          %1849 = dma.vmem_to_hbm [thread:$0]  %s1844, 256, %s1842, %s1830, 128, 128, 8
        $region112: #{tpu_custom_call.1} parent=75 // pred_fallthru
          _
      $region76: #{tpu_custom_call.1} parent=5 // pred_fallthru
        _
      %p1850 = scmp.le.s32.totalorder 2, %s32
      // Predicated region
      $region113: #{tpu_custom_call.1} parent=5 // pred_check
        %p1851 = pneg %p1850
      $region114: #{tpu_custom_call.1} parent=5 // pred_check_branch
        %1853 = sbr.rel (%p1851) target = $region116
      $region115: #{tpu_custom_call.1} parent=5 // pred_region
        %s1854 = ssub.s32 %s32, 2
        // Predicated region
        $region117: #{tpu_custom_call.1} parent=115 // pred_check
          %p1855 = pneg %p370
        $region118: #{tpu_custom_call.1} parent=115 // pred_check_branch
          %1857 = sbr.rel (%p1855) target = $region120
        $region119: #{tpu_custom_call.1} parent=115 // pred_region
          %s1858 = sand.u32 %s355, 1
          %s1859 = scalar_lea.sflag [#allocation4], %s1858
          %s1860 = sand.u32 %s355, 1
          %s1861 = smul.addr %s1860, 16
          %s1862 = scalar_lea.vmem [#allocation16], %s1861
          %1863 = dma.done %s1859, 256
        $region120: #{tpu_custom_call.1} parent=115 // pred_fallthru
          _
      $region116: #{tpu_custom_call.1} parent=5 // pred_fallthru
        _
    $region6: #{tpu_custom_call.1} parent=1 // loop_footer
      %s36 = sadd.s32 1, %s32
    $region7: #{tpu_custom_call.1} parent=1 // loop_footer_branch
      %31 = sbr.rel target = $region3
    $region8: #{tpu_custom_call.1} parent=1 // loop_exit
      _
    %1864 = vsyncpa [#allocation3], 1
    %s1865 = scalar_lea.sflag [#allocation3], 1
    %1866 = vsyncpa %s1865, 1
    %1867 = vsyncpa [#allocation6], 1
    %s1868 = scalar_lea.sflag [#allocation6], 1
    %1869 = vsyncpa %s1868, 1
    %1870 = vsyncpa [#allocation9], 1
    %1871 = vsyncpa [#allocation12], 1
    %1872 = vsyncpa [#allocation15], 1
    %1873 = vsyncpa [#allocation4], 1
    %s1874 = scalar_lea.sflag [#allocation4], 1
    %1875 = vsyncpa %s1874, 1

</llo_original>
